<compile_context>
chip_gen: v5e
topology: v5e:2x2
jax: 0.10.0
libtpu: 0.0.40
codegen_flags: <defaults>
</compile_context>

<pallas_src>
import functools

import jax
import jax.numpy as jnp
from jax import lax
from jax.experimental import pallas as pl
from jax.experimental.pallas import tpu as pltpu


def _reconstruct_kernel(filt_ref,   # SMEM (K*F*F,)   neighbour-extraction filter
                        oxp_ref,    # VMEM (H+2p, W+2p) reflection-padded offset_x
                        oyp_ref,    # VMEM (H+2p, W+2p) reflection-padded offset_y
                        xc_ref,     # VMEM (TH, W)    x_coordinate rows of this block
                        yc_ref,     # VMEM (TH, W)    y_coordinate rows of this block
                        img_ref,    # VMEM (C*H, W)   bf16 image, row c*H+hh = right[c, hh, :]
                        out_ref,    # VMEM (C, TH, W) lane-dense output block / accumulator
                        *, H, W, F, K, TH, C):
    i = pl.program_id(0)            # output row block   ("parallel")
    k = pl.program_id(1)            # voted offset field ("arbitrary" reduction)
    FF = F * F

    @pl.when(k == 0)
    def _init():
        out_ref[...] = jnp.zeros_like(out_ref)

    # --- neighbour-extraction conv: VALID conv over the reflection-padded
    #     offsets, restricted to this block's TH output rows. One row-band load
    #     per dy; accumulator initialized from the first tap. ------------------
    row0 = pl.multiple_of(i * TH, TH)
    sm_x = None
    sm_y = None
    for dy in range(F):
        band_x = oxp_ref[pl.ds(row0 + dy, TH), :]          # (TH, W + F - 1)
        band_y = oyp_ref[pl.ds(row0 + dy, TH), :]
        for dx in range(F):
            w = filt_ref[k * FF + dy * F + dx]             # scalar from SMEM
            tx = w * band_x[:, dx:dx + W]
            ty = w * band_y[:, dx:dx + W]
            if sm_x is None:
                sm_x, sm_y = tx, ty
            else:
                sm_x, sm_y = sm_x + tx, sm_y + ty

    # --- coordinates + clamp; align_corners=False unnormalize == 0.5 shift ----
    ix = jnp.clip(xc_ref[...] - sm_x, 0.0, float(W - 1)) - 0.5     # (TH, W)
    iy = jnp.clip(yc_ref[...] - sm_y, 0.0, float(H - 1)) - 0.5     # (TH, W)

    # Source-position vectors along sublanes (f32, no integer modulo).
    iota_x = lax.broadcasted_iota(jnp.int32, (W, 1), 0).astype(jnp.float32)
    iota_y = lax.broadcasted_iota(jnp.int32, (H, 1), 0).astype(jnp.float32)

    img_bf = img_ref[...]                                          # (C*H, W) bf16

    rows = [[] for _ in range(C)]                  # per-channel (1, W) output rows
    for h in range(TH):
        ix_row = ix[h:h + 1, :]                                    # (1, W_out)
        iy_row = iy[h:h + 1, :]                                    # (1, W_out)
        # Separable bilinear "hat" weights (zeros padding falls out of the clamp;
        # source index on sublanes, output pixel on lanes).
        rxT = jnp.maximum(0.0, 1.0 - jnp.abs(iota_x - ix_row))     # (W_src, W_out)
        ryT = jnp.maximum(0.0, 1.0 - jnp.abs(iota_y - iy_row))     # (H_src, W_out)
        # x-interpolation for all channels in one MXU matmul (bf16 in, f32 acc):
        #   t[c*H + hh, w_out] = sum_x img[c*H + hh, x] * rxT[x, w_out]
        t = lax.dot_general(img_bf, rxT.astype(jnp.bfloat16),
                            (((1,), (0,)), ((), ())),
                            preferred_element_type=jnp.float32)    # (C*H, W_out)
        # y-interpolation: per-channel VPU multiply + sublane reduce (XLU).
        for c in range(C):
            tc = t[c * H:(c + 1) * H, :]                           # (H_src, W_out)
            rows[c].append(jnp.sum(tc * ryT, axis=0, keepdims=True))   # (1, W_out)

    # Lane-dense accumulation into the K-resident output block.
    for c in range(C):
        out_ref[c] = out_ref[c] + jnp.concatenate(rows[c], axis=0)     # (TH, W)

    @pl.when(k == K - 1)
    def _finalize():
        out_ref[...] = out_ref[...] * (1.0 / K)        # mean over the K fields


def reconstruct_pallas(right_input, offset_x, offset_y, x_coordinate, y_coordinate,
                       neighbour_extraction_filter, filter_size, row_block=8):
    """right_input: (1,C,H,W); offset_*, *_coordinate: (1,1,H,W); filter: (K,1,F,F)."""
    F = filter_size
    pad = F // 2
    B, C, H, W = right_input.shape
    assert B == 1, "torch module's repeat/mean semantics assume batch 1"
    K = neighbour_extraction_filter.shape[0]
    Hp, Wp = H + 2 * pad, W + 2 * pad

    # TH = largest divisor of H that is <= row_block (no TH=H fallback, so the
    # "parallel" axis has NB >= 2 whenever H > row_block).
    TH = 1
    for d in range(min(row_block, H), 0, -1):
        if H % d == 0:
            TH = d
            break
    NB = H // TH

    # Reflection padding is layout glue; the neighbour-extraction conv itself
    # runs inside the kernel.
    ox_pad = jnp.pad(offset_x[0, 0], pad, mode="reflect").astype(jnp.float32)
    oy_pad = jnp.pad(offset_y[0, 0], pad, mode="reflect").astype(jnp.float32)
    xc = x_coordinate[0, 0].astype(jnp.float32)
    yc = y_coordinate[0, 0].astype(jnp.float32)
    # Image flattened to (C*H, W), bf16 MXU operand (f32 accumulation in kernel).
    img_ch = right_input[0].astype(jnp.float32).reshape(C * H, W).astype(jnp.bfloat16)
    # Flat 1-D SMEM filter (avoids 2-D SMEM row padding).
    filt = neighbour_extraction_filter.astype(jnp.float32).reshape(K * F * F)

    # Per-block VMEM estimate (double-buffered blocks + per-row intermediates),
    # clamped to stay safe on the 64 MiB (v7x) parts.
    est_bytes = (2 * 2 * Hp * Wp * 4            # padded offsets, x2 buffers
                 + 2 * 2 * TH * W * 4           # coordinate blocks, x2 buffers
                 + 2 * C * H * W * 2            # bf16 image, x2 buffers
                 + 2 * C * TH * W * 4           # output block, x2 buffers
                 + 2 * (W * W + H * W + C * H * W + 4 * TH * W) * 4)  # intermediates
    vmem_limit = int(min(max(32 * 1024 * 1024, 2 * est_bytes), 64 * 1024 * 1024))

    kernel = functools.partial(_reconstruct_kernel, H=H, W=W, F=F, K=K, TH=TH, C=C)
    out_chw = pl.pallas_call(
        kernel,
        out_shape=jax.ShapeDtypeStruct((C, H, W), jnp.float32),
        grid=(NB, K),                     # (output row blocks, voted offset fields)
        in_specs=[
            pl.BlockSpec(memory_space=pltpu.MemorySpace.SMEM),      # filter (K*F*F,)
            pl.BlockSpec((Hp, Wp), lambda i, k: (0, 0)),            # padded offset_x
            pl.BlockSpec((Hp, Wp), lambda i, k: (0, 0)),            # padded offset_y
            pl.BlockSpec((TH, W), lambda i, k: (i, 0)),             # x_coordinate rows
            pl.BlockSpec((TH, W), lambda i, k: (i, 0)),             # y_coordinate rows
            pl.BlockSpec((C * H, W), lambda i, k: (0, 0)),          # image (C*H, W) bf16
        ],
        out_specs=pl.BlockSpec((C, TH, W), lambda i, k: (0, i, 0)),  # lane-dense output
        compiler_params=pltpu.CompilerParams(
            dimension_semantics=("parallel", "arbitrary"),
            vmem_limit_bytes=vmem_limit),
    )(filt, ox_pad, oy_pad, xc, yc, img_ch)

    return out_chw[None]                                            # (1, C, H, W)


def reconstruct_reference(right_input, offset_x, offset_y, x_coordinate, y_coordinate,
                          neighbour_extraction_filter, filter_size):
    """Pure-JAX reference (gather-based grid_sample) for correctness checking."""
    F = filter_size
    pad = F // 2
    _, C, H, W = right_input.shape
    K = neighbour_extraction_filter.shape[0]
    ox_pad = jnp.pad(offset_x[0, 0], pad, mode="reflect")
    oy_pad = jnp.pad(offset_y[0, 0], pad, mode="reflect")
    img = right_input[0]
    xc = x_coordinate[0, 0]
    yc = y_coordinate[0, 0]
    acc = jnp.zeros((C, H, W), jnp.float32)
    for k in range(K):
        sm_x = jnp.zeros((H, W), jnp.float32)
        sm_y = jnp.zeros((H, W), jnp.float32)
        for dy in range(F):
            for dx in range(F):
                w = neighbour_extraction_filter[k, 0, dy, dx]
                sm_x = sm_x + w * ox_pad[dy:dy + H, dx:dx + W]
                sm_y = sm_y + w * oy_pad[dy:dy + H, dx:dx + W]
        coord_x = jnp.clip(xc - sm_x, 0.0, W - 1.0)
        coord_y = jnp.clip(yc - sm_y, 0.0, H - 1.0)
        gx = (coord_x - W / 2.0) / (W / 2.0)
        gy = (coord_y - H / 2.0) / (H / 2.0)
        ix = ((gx + 1.0) * W - 1.0) * 0.5
        iy = ((gy + 1.0) * H - 1.0) * 0.5
        x0 = jnp.floor(ix).astype(jnp.int32)
        y0 = jnp.floor(iy).astype(jnp.int32)
        wx1 = ix - x0.astype(jnp.float32)
        wx0 = 1.0 - wx1
        wy1 = iy - y0.astype(jnp.float32)
        wy0 = 1.0 - wy1

        def tap(xi, yi, wgt):
            valid = ((xi >= 0) & (xi < W) & (yi >= 0) & (yi < H)).astype(jnp.float32)
            v = img[:, jnp.clip(yi, 0, H - 1), jnp.clip(xi, 0, W - 1)]
            return v * (wgt * valid)[None]

        acc = acc + (tap(x0, y0, wx0 * wy0) + tap(x0 + 1, y0, wx1 * wy0)
                     + tap(x0, y0 + 1, wx0 * wy1) + tap(x0 + 1, y0 + 1, wx1 * wy1))
    return (acc / K)[None]


if __name__ == "__main__":
    key = jax.random.PRNGKey(0)
    k1, k2, k3 = jax.random.split(key, 3)

    B, C, H, W = 1, 3, 16, 16
    filter_size = 3
    K = filter_size * filter_size

    right_input = jax.random.uniform(k1, (B, C, H, W), jnp.float32)
    # Synthetic NNF offsets (PatchMatch output stand-in).
    offset_x = jax.random.uniform(k2, (B, 1, H, W), jnp.float32, minval=-3.0, maxval=3.0)
    offset_y = jax.random.uniform(k3, (B, 1, H, W), jnp.float32, minval=-3.0, maxval=3.0)

    xg, yg = jnp.meshgrid(jnp.arange(W, dtype=jnp.float32),
                          jnp.arange(H, dtype=jnp.float32))
    x_coordinate = xg.reshape(1, 1, H, W)
    y_coordinate = yg.reshape(1, 1, H, W)

    # Deterministic one-hot neighbour-extraction filter (K, 1, F, F), as built
    # by the feature extractor (each output channel picks one patch position).
    neighbour_extraction_filter = jnp.eye(K, dtype=jnp.float32).reshape(
        K, 1, filter_size, filter_size)

    out = reconstruct_pallas(right_input, offset_x, offset_y,
                             x_coordinate, y_coordinate,
                             neighbour_extraction_filter, filter_size)
    out = jax.block_until_ready(out)

    ref = reconstruct_reference(right_input, offset_x, offset_y,
                                x_coordinate, y_coordinate,
                                neighbour_extraction_filter, filter_size)

    assert out.shape == (1, C, H, W), out.shape
    max_err = float(jnp.max(jnp.abs(out - ref)))
    assert max_err < 2e-2, f"max abs error {max_err}"
    print("KERNEL_OK")
</pallas_src>

<mosaic_0001>
module attributes {stable_mosaic.version = 11 : i64} {
  func.func @_reconstruct_kernel(%arg0: i32, %arg1: i32, %arg2: memref<81xf32, #tpu.memory_space<smem>>, %arg3: memref<18x18xf32, #tpu.memory_space<vmem>>, %arg4: memref<18x18xf32, #tpu.memory_space<vmem>>, %arg5: memref<8x16xf32, #tpu.memory_space<vmem>>, %arg6: memref<8x16xf32, #tpu.memory_space<vmem>>, %arg7: memref<48x16xbf16, #tpu.memory_space<vmem>>, %arg8: memref<3x8x16xf32, #tpu.memory_space<vmem>>) attributes {dimension_semantics = [#tpu.dimension_semantics<parallel>, #tpu.dimension_semantics<arbitrary>], iteration_bounds = array<i64: 2, 9>, scalar_prefetch = 0 : i64, scratch_operands = 0 : i64, tpu.core_type = #tpu.core_type<tc>, window_params = [{transform_indices = @transform_0, window_bounds = array<i64: 81>}, {pipeline_mode = #tpu.pipeline_mode<synchronous>, transform_indices = @transform_1, window_bounds = array<i64: 18, 18>}, {pipeline_mode = #tpu.pipeline_mode<synchronous>, transform_indices = @transform_2, window_bounds = array<i64: 18, 18>}, {transform_indices = @transform_3, window_bounds = array<i64: 8, 16>}, {transform_indices = @transform_4, window_bounds = array<i64: 8, 16>}, {pipeline_mode = #tpu.pipeline_mode<synchronous>, transform_indices = @transform_5, window_bounds = array<i64: 48, 16>}, {transform_indices = @transform_6, window_bounds = array<i64: 3, 8, 16>}]} {
    %c0_i32 = arith.constant 0 : i32
    %0 = arith.cmpi eq, %arg1, %c0_i32 : i32
    %1 = arith.extui %0 : i1 to i32
    %c0_i32_0 = arith.constant 0 : i32
    %2 = arith.cmpi ne, %1, %c0_i32_0 : i32
    scf.if %2 {
      %cst_127 = arith.constant 0.000000e+00 : f32
      %439 = vector.broadcast %cst_127 : f32 to vector<3x8x16xf32>
      %c0_128 = arith.constant 0 : index
      %c0_129 = arith.constant 0 : index
      %c0_130 = arith.constant 0 : index
      %440 = vector.load %arg8[%c0_128, %c0_129, %c0_130] : memref<3x8x16xf32, #tpu.memory_space<vmem>>, vector<3x8x16xf32>
      tpu.vector_store %arg8[%c0_128, %c0_129, %c0_130], %439 {strides = array<i32>} : memref<3x8x16xf32, #tpu.memory_space<vmem>>, vector<3x8x16xf32>,
    } else {
    }
    %c8_i32 = arith.constant 8 : i32
    %3 = arith.muli %arg0, %c8_i32 : i32
    %4 = tpu.assume_multiple %3, 8 : i32
    %c0_i32_1 = arith.constant 0 : i32
    %5 = arith.addi %4, %c0_i32_1 : i32
    %6 = arith.index_cast %5 : i32 to index
    %c0 = arith.constant 0 : index
    %7 = vector.load %arg3[%6, %c0] : memref<18x18xf32, #tpu.memory_space<vmem>>, vector<8x18xf32>
    %c0_i32_2 = arith.constant 0 : i32
    %8 = arith.addi %4, %c0_i32_2 : i32
    %9 = arith.index_cast %8 : i32 to index
    %c0_3 = arith.constant 0 : index
    %10 = vector.load %arg4[%9, %c0_3] : memref<18x18xf32, #tpu.memory_space<vmem>>, vector<8x18xf32>
    %c9_i32 = arith.constant 9 : i32
    %11 = arith.muli %arg1, %c9_i32 : i32
    %c0_i32_4 = arith.constant 0 : i32
    %12 = arith.addi %11, %c0_i32_4 : i32
    %c0_i32_5 = arith.constant 0 : i32
    %13 = arith.addi %12, %c0_i32_5 : i32
    %14 = arith.index_cast %13 : i32 to index
    %15 = memref.load %arg2[%14] : memref<81xf32, #tpu.memory_space<smem>>
    %16 = vector.extract_strided_slice %7 {offsets = [0, 0], sizes = [8, 16], strides = [1, 1]} : vector<8x18xf32> to vector<8x16xf32>
    %17 = vector.broadcast %15 : f32 to vector<8x16xf32>
    %18 = arith.mulf %17, %16 : vector<8x16xf32>
    %19 = vector.extract_strided_slice %10 {offsets = [0, 0], sizes = [8, 16], strides = [1, 1]} : vector<8x18xf32> to vector<8x16xf32>
    %20 = vector.broadcast %15 : f32 to vector<8x16xf32>
    %21 = arith.mulf %20, %19 : vector<8x16xf32>
    %c9_i32_6 = arith.constant 9 : i32
    %22 = arith.muli %arg1, %c9_i32_6 : i32
    %c0_i32_7 = arith.constant 0 : i32
    %23 = arith.addi %22, %c0_i32_7 : i32
    %c1_i32 = arith.constant 1 : i32
    %24 = arith.addi %23, %c1_i32 : i32
    %25 = arith.index_cast %24 : i32 to index
    %26 = memref.load %arg2[%25] : memref<81xf32, #tpu.memory_space<smem>>
    %27 = vector.extract_strided_slice %7 {offsets = [0, 1], sizes = [8, 16], strides = [1, 1]} : vector<8x18xf32> to vector<8x16xf32>
    %28 = vector.broadcast %26 : f32 to vector<8x16xf32>
    %29 = arith.mulf %28, %27 : vector<8x16xf32>
    %30 = vector.extract_strided_slice %10 {offsets = [0, 1], sizes = [8, 16], strides = [1, 1]} : vector<8x18xf32> to vector<8x16xf32>
    %31 = vector.broadcast %26 : f32 to vector<8x16xf32>
    %32 = arith.mulf %31, %30 : vector<8x16xf32>
    %33 = arith.addf %18, %29 : vector<8x16xf32>
    %34 = arith.addf %21, %32 : vector<8x16xf32>
    %c9_i32_8 = arith.constant 9 : i32
    %35 = arith.muli %arg1, %c9_i32_8 : i32
    %c0_i32_9 = arith.constant 0 : i32
    %36 = arith.addi %35, %c0_i32_9 : i32
    %c2_i32 = arith.constant 2 : i32
    %37 = arith.addi %36, %c2_i32 : i32
    %38 = arith.index_cast %37 : i32 to index
    %39 = memref.load %arg2[%38] : memref<81xf32, #tpu.memory_space<smem>>
    %40 = vector.extract_strided_slice %7 {offsets = [0, 2], sizes = [8, 16], strides = [1, 1]} : vector<8x18xf32> to vector<8x16xf32>
    %41 = vector.broadcast %39 : f32 to vector<8x16xf32>
    %42 = arith.mulf %41, %40 : vector<8x16xf32>
    %43 = vector.extract_strided_slice %10 {offsets = [0, 2], sizes = [8, 16], strides = [1, 1]} : vector<8x18xf32> to vector<8x16xf32>
    %44 = vector.broadcast %39 : f32 to vector<8x16xf32>
    %45 = arith.mulf %44, %43 : vector<8x16xf32>
    %46 = arith.addf %33, %42 : vector<8x16xf32>
    %47 = arith.addf %34, %45 : vector<8x16xf32>
    %c1_i32_10 = arith.constant 1 : i32
    %48 = arith.addi %4, %c1_i32_10 : i32
    %49 = arith.index_cast %48 : i32 to index
    %c0_11 = arith.constant 0 : index
    %50 = vector.load %arg3[%49, %c0_11] : memref<18x18xf32, #tpu.memory_space<vmem>>, vector<8x18xf32>
    %c1_i32_12 = arith.constant 1 : i32
    %51 = arith.addi %4, %c1_i32_12 : i32
    %52 = arith.index_cast %51 : i32 to index
    %c0_13 = arith.constant 0 : index
    %53 = vector.load %arg4[%52, %c0_13] : memref<18x18xf32, #tpu.memory_space<vmem>>, vector<8x18xf32>
    %c9_i32_14 = arith.constant 9 : i32
    %54 = arith.muli %arg1, %c9_i32_14 : i32
    %c3_i32 = arith.constant 3 : i32
    %55 = arith.addi %54, %c3_i32 : i32
    %c0_i32_15 = arith.constant 0 : i32
    %56 = arith.addi %55, %c0_i32_15 : i32
    %57 = arith.index_cast %56 : i32 to index
    %58 = memref.load %arg2[%57] : memref<81xf32, #tpu.memory_space<smem>>
    %59 = vector.extract_strided_slice %50 {offsets = [0, 0], sizes = [8, 16], strides = [1, 1]} : vector<8x18xf32> to vector<8x16xf32>
    %60 = vector.broadcast %58 : f32 to vector<8x16xf32>
    %61 = arith.mulf %60, %59 : vector<8x16xf32>
    %62 = vector.extract_strided_slice %53 {offsets = [0, 0], sizes = [8, 16], strides = [1, 1]} : vector<8x18xf32> to vector<8x16xf32>
    %63 = vector.broadcast %58 : f32 to vector<8x16xf32>
    %64 = arith.mulf %63, %62 : vector<8x16xf32>
    %65 = arith.addf %46, %61 : vector<8x16xf32>
    %66 = arith.addf %47, %64 : vector<8x16xf32>
    %c9_i32_16 = arith.constant 9 : i32
    %67 = arith.muli %arg1, %c9_i32_16 : i32
    %c3_i32_17 = arith.constant 3 : i32
    %68 = arith.addi %67, %c3_i32_17 : i32
    %c1_i32_18 = arith.constant 1 : i32
    %69 = arith.addi %68, %c1_i32_18 : i32
    %70 = arith.index_cast %69 : i32 to index
    %71 = memref.load %arg2[%70] : memref<81xf32, #tpu.memory_space<smem>>
    %72 = vector.extract_strided_slice %50 {offsets = [0, 1], sizes = [8, 16], strides = [1, 1]} : vector<8x18xf32> to vector<8x16xf32>
    %73 = vector.broadcast %71 : f32 to vector<8x16xf32>
    %74 = arith.mulf %73, %72 : vector<8x16xf32>
    %75 = vector.extract_strided_slice %53 {offsets = [0, 1], sizes = [8, 16], strides = [1, 1]} : vector<8x18xf32> to vector<8x16xf32>
    %76 = vector.broadcast %71 : f32 to vector<8x16xf32>
    %77 = arith.mulf %76, %75 : vector<8x16xf32>
    %78 = arith.addf %65, %74 : vector<8x16xf32>
    %79 = arith.addf %66, %77 : vector<8x16xf32>
    %c9_i32_19 = arith.constant 9 : i32
    %80 = arith.muli %arg1, %c9_i32_19 : i32
    %c3_i32_20 = arith.constant 3 : i32
    %81 = arith.addi %80, %c3_i32_20 : i32
    %c2_i32_21 = arith.constant 2 : i32
    %82 = arith.addi %81, %c2_i32_21 : i32
    %83 = arith.index_cast %82 : i32 to index
    %84 = memref.load %arg2[%83] : memref<81xf32, #tpu.memory_space<smem>>
    %85 = vector.extract_strided_slice %50 {offsets = [0, 2], sizes = [8, 16], strides = [1, 1]} : vector<8x18xf32> to vector<8x16xf32>
    %86 = vector.broadcast %84 : f32 to vector<8x16xf32>
    %87 = arith.mulf %86, %85 : vector<8x16xf32>
    %88 = vector.extract_strided_slice %53 {offsets = [0, 2], sizes = [8, 16], strides = [1, 1]} : vector<8x18xf32> to vector<8x16xf32>
    %89 = vector.broadcast %84 : f32 to vector<8x16xf32>
    %90 = arith.mulf %89, %88 : vector<8x16xf32>
    %91 = arith.addf %78, %87 : vector<8x16xf32>
    %92 = arith.addf %79, %90 : vector<8x16xf32>
    %c2_i32_22 = arith.constant 2 : i32
    %93 = arith.addi %4, %c2_i32_22 : i32
    %94 = arith.index_cast %93 : i32 to index
    %c0_23 = arith.constant 0 : index
    %95 = vector.load %arg3[%94, %c0_23] : memref<18x18xf32, #tpu.memory_space<vmem>>, vector<8x18xf32>
    %c2_i32_24 = arith.constant 2 : i32
    %96 = arith.addi %4, %c2_i32_24 : i32
    %97 = arith.index_cast %96 : i32 to index
    %c0_25 = arith.constant 0 : index
    %98 = vector.load %arg4[%97, %c0_25] : memref<18x18xf32, #tpu.memory_space<vmem>>, vector<8x18xf32>
    %c9_i32_26 = arith.constant 9 : i32
    %99 = arith.muli %arg1, %c9_i32_26 : i32
    %c6_i32 = arith.constant 6 : i32
    %100 = arith.addi %99, %c6_i32 : i32
    %c0_i32_27 = arith.constant 0 : i32
    %101 = arith.addi %100, %c0_i32_27 : i32
    %102 = arith.index_cast %101 : i32 to index
    %103 = memref.load %arg2[%102] : memref<81xf32, #tpu.memory_space<smem>>
    %104 = vector.extract_strided_slice %95 {offsets = [0, 0], sizes = [8, 16], strides = [1, 1]} : vector<8x18xf32> to vector<8x16xf32>
    %105 = vector.broadcast %103 : f32 to vector<8x16xf32>
    %106 = arith.mulf %105, %104 : vector<8x16xf32>
    %107 = vector.extract_strided_slice %98 {offsets = [0, 0], sizes = [8, 16], strides = [1, 1]} : vector<8x18xf32> to vector<8x16xf32>
    %108 = vector.broadcast %103 : f32 to vector<8x16xf32>
    %109 = arith.mulf %108, %107 : vector<8x16xf32>
    %110 = arith.addf %91, %106 : vector<8x16xf32>
    %111 = arith.addf %92, %109 : vector<8x16xf32>
    %c9_i32_28 = arith.constant 9 : i32
    %112 = arith.muli %arg1, %c9_i32_28 : i32
    %c6_i32_29 = arith.constant 6 : i32
    %113 = arith.addi %112, %c6_i32_29 : i32
    %c1_i32_30 = arith.constant 1 : i32
    %114 = arith.addi %113, %c1_i32_30 : i32
    %115 = arith.index_cast %114 : i32 to index
    %116 = memref.load %arg2[%115] : memref<81xf32, #tpu.memory_space<smem>>
    %117 = vector.extract_strided_slice %95 {offsets = [0, 1], sizes = [8, 16], strides = [1, 1]} : vector<8x18xf32> to vector<8x16xf32>
    %118 = vector.broadcast %116 : f32 to vector<8x16xf32>
    %119 = arith.mulf %118, %117 : vector<8x16xf32>
    %120 = vector.extract_strided_slice %98 {offsets = [0, 1], sizes = [8, 16], strides = [1, 1]} : vector<8x18xf32> to vector<8x16xf32>
    %121 = vector.broadcast %116 : f32 to vector<8x16xf32>
    %122 = arith.mulf %121, %120 : vector<8x16xf32>
    %123 = arith.addf %110, %119 : vector<8x16xf32>
    %124 = arith.addf %111, %122 : vector<8x16xf32>
    %c9_i32_31 = arith.constant 9 : i32
    %125 = arith.muli %arg1, %c9_i32_31 : i32
    %c6_i32_32 = arith.constant 6 : i32
    %126 = arith.addi %125, %c6_i32_32 : i32
    %c2_i32_33 = arith.constant 2 : i32
    %127 = arith.addi %126, %c2_i32_33 : i32
    %128 = arith.index_cast %127 : i32 to index
    %129 = memref.load %arg2[%128] : memref<81xf32, #tpu.memory_space<smem>>
    %130 = vector.extract_strided_slice %95 {offsets = [0, 2], sizes = [8, 16], strides = [1, 1]} : vector<8x18xf32> to vector<8x16xf32>
    %131 = vector.broadcast %129 : f32 to vector<8x16xf32>
    %132 = arith.mulf %131, %130 : vector<8x16xf32>
    %133 = vector.extract_strided_slice %98 {offsets = [0, 2], sizes = [8, 16], strides = [1, 1]} : vector<8x18xf32> to vector<8x16xf32>
    %134 = vector.broadcast %129 : f32 to vector<8x16xf32>
    %135 = arith.mulf %134, %133 : vector<8x16xf32>
    %136 = arith.addf %123, %132 : vector<8x16xf32>
    %137 = arith.addf %124, %135 : vector<8x16xf32>
    %c0_34 = arith.constant 0 : index
    %c0_35 = arith.constant 0 : index
    %138 = vector.load %arg5[%c0_34, %c0_35] : memref<8x16xf32, #tpu.memory_space<vmem>>, vector<8x16xf32>
    %139 = arith.subf %138, %136 : vector<8x16xf32>
    %cst = arith.constant 0.000000e+00 : f32
    %cst_36 = arith.constant 1.500000e+01 : f32
    %140 = vector.broadcast %cst : f32 to vector<8x16xf32>
    %141 = arith.maximumf %140, %139 : vector<8x16xf32>
    %142 = vector.broadcast %cst_36 : f32 to vector<8x16xf32>
    %143 = arith.minimumf %142, %141 : vector<8x16xf32>
    %cst_37 = arith.constant 5.000000e-01 : f32
    %144 = vector.broadcast %cst_37 : f32 to vector<8x16xf32>
    %145 = arith.subf %143, %144 : vector<8x16xf32>
    %c0_38 = arith.constant 0 : index
    %c0_39 = arith.constant 0 : index
    %146 = vector.load %arg6[%c0_38, %c0_39] : memref<8x16xf32, #tpu.memory_space<vmem>>, vector<8x16xf32>
    %147 = arith.subf %146, %137 : vector<8x16xf32>
    %cst_40 = arith.constant 0.000000e+00 : f32
    %cst_41 = arith.constant 1.500000e+01 : f32
    %148 = vector.broadcast %cst_40 : f32 to vector<8x16xf32>
    %149 = arith.maximumf %148, %147 : vector<8x16xf32>
    %150 = vector.broadcast %cst_41 : f32 to vector<8x16xf32>
    %151 = arith.minimumf %150, %149 : vector<8x16xf32>
    %cst_42 = arith.constant 5.000000e-01 : f32
    %152 = vector.broadcast %cst_42 : f32 to vector<8x16xf32>
    %153 = arith.subf %151, %152 : vector<8x16xf32>
    %154 = tpu.iota {dimensions = array<i32: 0>} : vector<16x1xi32>
    %155 = arith.sitofp %154 : vector<16x1xi32> to vector<16x1xf32>
    %156 = tpu.iota {dimensions = array<i32: 0>} : vector<16x1xi32>
    %157 = arith.sitofp %156 : vector<16x1xi32> to vector<16x1xf32>
    %c0_43 = arith.constant 0 : index
    %c0_44 = arith.constant 0 : index
    %158 = vector.load %arg7[%c0_43, %c0_44] : memref<48x16xbf16, #tpu.memory_space<vmem>>, vector<48x16xbf16>
    %159 = vector.extract_strided_slice %145 {offsets = [0, 0], sizes = [1, 16], strides = [1, 1]} : vector<8x16xf32> to vector<1x16xf32>
    %160 = vector.extract_strided_slice %153 {offsets = [0, 0], sizes = [1, 16], strides = [1, 1]} : vector<8x16xf32> to vector<1x16xf32>
    %161 = vector.broadcast %155 : vector<16x1xf32> to vector<16x16xf32>
    %162 = vector.broadcast %159 : vector<1x16xf32> to vector<16x16xf32>
    %163 = arith.subf %161, %162 : vector<16x16xf32>
    %164 = math.absf %163 : vector<16x16xf32>
    %cst_45 = arith.constant 1.000000e+00 : f32
    %165 = vector.broadcast %cst_45 : f32 to vector<16x16xf32>
    %166 = arith.subf %165, %164 : vector<16x16xf32>
    %cst_46 = arith.constant 0.000000e+00 : f32
    %167 = vector.broadcast %cst_46 : f32 to vector<16x16xf32>
    %168 = arith.maximumf %167, %166 : vector<16x16xf32>
    %169 = vector.broadcast %157 : vector<16x1xf32> to vector<16x16xf32>
    %170 = vector.broadcast %160 : vector<1x16xf32> to vector<16x16xf32>
    %171 = arith.subf %169, %170 : vector<16x16xf32>
    %172 = math.absf %171 : vector<16x16xf32>
    %cst_47 = arith.constant 1.000000e+00 : f32
    %173 = vector.broadcast %cst_47 : f32 to vector<16x16xf32>
    %174 = arith.subf %173, %172 : vector<16x16xf32>
    %cst_48 = arith.constant 0.000000e+00 : f32
    %175 = vector.broadcast %cst_48 : f32 to vector<16x16xf32>
    %176 = arith.maximumf %175, %174 : vector<16x16xf32>
    %177 = arith.truncf %168 : vector<16x16xf32> to vector<16x16xbf16>
    %cst_49 = arith.constant dense<0.000000e+00> : vector<48x16xf32>
    %178 = tpu.matmul %158, %177, %cst_49 {dimension_numbers = #tpu.dot_dimension_numbers<[1], [0], [0], [1], [0, 0, 1, 1], [], []>} : vector<48x16xbf16>, vector<16x16xbf16>, vector<48x16xf32> -> vector<48x16xf32>
    %179 = vector.extract_strided_slice %178 {offsets = [0, 0], sizes = [16, 16], strides = [1, 1]} : vector<48x16xf32> to vector<16x16xf32>
    %180 = arith.mulf %179, %176 : vector<16x16xf32>
    %cst_50 = arith.constant dense<0.000000e+00> : vector<16xf32>
    %181 = vector.multi_reduction <add>, %180, %cst_50 [0] : vector<16x16xf32> to vector<16xf32>
    %182 = vector.shape_cast %181 : vector<16xf32> to vector<1x16xf32>
    %183 = vector.extract_strided_slice %178 {offsets = [16, 0], sizes = [16, 16], strides = [1, 1]} : vector<48x16xf32> to vector<16x16xf32>
    %184 = arith.mulf %183, %176 : vector<16x16xf32>
    %cst_51 = arith.constant dense<0.000000e+00> : vector<16xf32>
    %185 = vector.multi_reduction <add>, %184, %cst_51 [0] : vector<16x16xf32> to vector<16xf32>
    %186 = vector.shape_cast %185 : vector<16xf32> to vector<1x16xf32>
    %187 = vector.extract_strided_slice %178 {offsets = [32, 0], sizes = [16, 16], strides = [1, 1]} : vector<48x16xf32> to vector<16x16xf32>
    %188 = arith.mulf %187, %176 : vector<16x16xf32>
    %cst_52 = arith.constant dense<0.000000e+00> : vector<16xf32>
    %189 = vector.multi_reduction <add>, %188, %cst_52 [0] : vector<16x16xf32> to vector<16xf32>
    %190 = vector.shape_cast %189 : vector<16xf32> to vector<1x16xf32>
    %191 = vector.extract_strided_slice %145 {offsets = [1, 0], sizes = [1, 16], strides = [1, 1]} : vector<8x16xf32> to vector<1x16xf32>
    %192 = vector.extract_strided_slice %153 {offsets = [1, 0], sizes = [1, 16], strides = [1, 1]} : vector<8x16xf32> to vector<1x16xf32>
    %193 = vector.broadcast %155 : vector<16x1xf32> to vector<16x16xf32>
    %194 = vector.broadcast %191 : vector<1x16xf32> to vector<16x16xf32>
    %195 = arith.subf %193, %194 : vector<16x16xf32>
    %196 = math.absf %195 : vector<16x16xf32>
    %cst_53 = arith.constant 1.000000e+00 : f32
    %197 = vector.broadcast %cst_53 : f32 to vector<16x16xf32>
    %198 = arith.subf %197, %196 : vector<16x16xf32>
    %cst_54 = arith.constant 0.000000e+00 : f32
    %199 = vector.broadcast %cst_54 : f32 to vector<16x16xf32>
    %200 = arith.maximumf %199, %198 : vector<16x16xf32>
    %201 = vector.broadcast %157 : vector<16x1xf32> to vector<16x16xf32>
    %202 = vector.broadcast %192 : vector<1x16xf32> to vector<16x16xf32>
    %203 = arith.subf %201, %202 : vector<16x16xf32>
    %204 = math.absf %203 : vector<16x16xf32>
    %cst_55 = arith.constant 1.000000e+00 : f32
    %205 = vector.broadcast %cst_55 : f32 to vector<16x16xf32>
    %206 = arith.subf %205, %204 : vector<16x16xf32>
    %cst_56 = arith.constant 0.000000e+00 : f32
    %207 = vector.broadcast %cst_56 : f32 to vector<16x16xf32>
    %208 = arith.maximumf %207, %206 : vector<16x16xf32>
    %209 = arith.truncf %200 : vector<16x16xf32> to vector<16x16xbf16>
    %cst_57 = arith.constant dense<0.000000e+00> : vector<48x16xf32>
    %210 = tpu.matmul %158, %209, %cst_57 {dimension_numbers = #tpu.dot_dimension_numbers<[1], [0], [0], [1], [0, 0, 1, 1], [], []>} : vector<48x16xbf16>, vector<16x16xbf16>, vector<48x16xf32> -> vector<48x16xf32>
    %211 = vector.extract_strided_slice %210 {offsets = [0, 0], sizes = [16, 16], strides = [1, 1]} : vector<48x16xf32> to vector<16x16xf32>
    %212 = arith.mulf %211, %208 : vector<16x16xf32>
    %cst_58 = arith.constant dense<0.000000e+00> : vector<16xf32>
    %213 = vector.multi_reduction <add>, %212, %cst_58 [0] : vector<16x16xf32> to vector<16xf32>
    %214 = vector.shape_cast %213 : vector<16xf32> to vector<1x16xf32>
    %215 = vector.extract_strided_slice %210 {offsets = [16, 0], sizes = [16, 16], strides = [1, 1]} : vector<48x16xf32> to vector<16x16xf32>
    %216 = arith.mulf %215, %208 : vector<16x16xf32>
    %cst_59 = arith.constant dense<0.000000e+00> : vector<16xf32>
    %217 = vector.multi_reduction <add>, %216, %cst_59 [0] : vector<16x16xf32> to vector<16xf32>
    %218 = vector.shape_cast %217 : vector<16xf32> to vector<1x16xf32>
    %219 = vector.extract_strided_slice %210 {offsets = [32, 0], sizes = [16, 16], strides = [1, 1]} : vector<48x16xf32> to vector<16x16xf32>
    %220 = arith.mulf %219, %208 : vector<16x16xf32>
    %cst_60 = arith.constant dense<0.000000e+00> : vector<16xf32>
    %221 = vector.multi_reduction <add>, %220, %cst_60 [0] : vector<16x16xf32> to vector<16xf32>
    %222 = vector.shape_cast %221 : vector<16xf32> to vector<1x16xf32>
    %223 = vector.extract_strided_slice %145 {offsets = [2, 0], sizes = [1, 16], strides = [1, 1]} : vector<8x16xf32> to vector<1x16xf32>
    %224 = vector.extract_strided_slice %153 {offsets = [2, 0], sizes = [1, 16], strides = [1, 1]} : vector<8x16xf32> to vector<1x16xf32>
    %225 = vector.broadcast %155 : vector<16x1xf32> to vector<16x16xf32>
    %226 = vector.broadcast %223 : vector<1x16xf32> to vector<16x16xf32>
    %227 = arith.subf %225, %226 : vector<16x16xf32>
    %228 = math.absf %227 : vector<16x16xf32>
    %cst_61 = arith.constant 1.000000e+00 : f32
    %229 = vector.broadcast %cst_61 : f32 to vector<16x16xf32>
    %230 = arith.subf %229, %228 : vector<16x16xf32>
    %cst_62 = arith.constant 0.000000e+00 : f32
    %231 = vector.broadcast %cst_62 : f32 to vector<16x16xf32>
    %232 = arith.maximumf %231, %230 : vector<16x16xf32>
    %233 = vector.broadcast %157 : vector<16x1xf32> to vector<16x16xf32>
    %234 = vector.broadcast %224 : vector<1x16xf32> to vector<16x16xf32>
    %235 = arith.subf %233, %234 : vector<16x16xf32>
    %236 = math.absf %235 : vector<16x16xf32>
    %cst_63 = arith.constant 1.000000e+00 : f32
    %237 = vector.broadcast %cst_63 : f32 to vector<16x16xf32>
    %238 = arith.subf %237, %236 : vector<16x16xf32>
    %cst_64 = arith.constant 0.000000e+00 : f32
    %239 = vector.broadcast %cst_64 : f32 to vector<16x16xf32>
    %240 = arith.maximumf %239, %238 : vector<16x16xf32>
    %241 = arith.truncf %232 : vector<16x16xf32> to vector<16x16xbf16>
    %cst_65 = arith.constant dense<0.000000e+00> : vector<48x16xf32>
    %242 = tpu.matmul %158, %241, %cst_65 {dimension_numbers = #tpu.dot_dimension_numbers<[1], [0], [0], [1], [0, 0, 1, 1], [], []>} : vector<48x16xbf16>, vector<16x16xbf16>, vector<48x16xf32> -> vector<48x16xf32>
    %243 = vector.extract_strided_slice %242 {offsets = [0, 0], sizes = [16, 16], strides = [1, 1]} : vector<48x16xf32> to vector<16x16xf32>
    %244 = arith.mulf %243, %240 : vector<16x16xf32>
    %cst_66 = arith.constant dense<0.000000e+00> : vector<16xf32>
    %245 = vector.multi_reduction <add>, %244, %cst_66 [0] : vector<16x16xf32> to vector<16xf32>
    %246 = vector.shape_cast %245 : vector<16xf32> to vector<1x16xf32>
    %247 = vector.extract_strided_slice %242 {offsets = [16, 0], sizes = [16, 16], strides = [1, 1]} : vector<48x16xf32> to vector<16x16xf32>
    %248 = arith.mulf %247, %240 : vector<16x16xf32>
    %cst_67 = arith.constant dense<0.000000e+00> : vector<16xf32>
    %249 = vector.multi_reduction <add>, %248, %cst_67 [0] : vector<16x16xf32> to vector<16xf32>
    %250 = vector.shape_cast %249 : vector<16xf32> to vector<1x16xf32>
    %251 = vector.extract_strided_slice %242 {offsets = [32, 0], sizes = [16, 16], strides = [1, 1]} : vector<48x16xf32> to vector<16x16xf32>
    %252 = arith.mulf %251, %240 : vector<16x16xf32>
    %cst_68 = arith.constant dense<0.000000e+00> : vector<16xf32>
    %253 = vector.multi_reduction <add>, %252, %cst_68 [0] : vector<16x16xf32> to vector<16xf32>
    %254 = vector.shape_cast %253 : vector<16xf32> to vector<1x16xf32>
    %255 = vector.extract_strided_slice %145 {offsets = [3, 0], sizes = [1, 16], strides = [1, 1]} : vector<8x16xf32> to vector<1x16xf32>
    %256 = vector.extract_strided_slice %153 {offsets = [3, 0], sizes = [1, 16], strides = [1, 1]} : vector<8x16xf32> to vector<1x16xf32>
    %257 = vector.broadcast %155 : vector<16x1xf32> to vector<16x16xf32>
    %258 = vector.broadcast %255 : vector<1x16xf32> to vector<16x16xf32>
    %259 = arith.subf %257, %258 : vector<16x16xf32>
    %260 = math.absf %259 : vector<16x16xf32>
    %cst_69 = arith.constant 1.000000e+00 : f32
    %261 = vector.broadcast %cst_69 : f32 to vector<16x16xf32>
    %262 = arith.subf %261, %260 : vector<16x16xf32>
    %cst_70 = arith.constant 0.000000e+00 : f32
    %263 = vector.broadcast %cst_70 : f32 to vector<16x16xf32>
    %264 = arith.maximumf %263, %262 : vector<16x16xf32>
    %265 = vector.broadcast %157 : vector<16x1xf32> to vector<16x16xf32>
    %266 = vector.broadcast %256 : vector<1x16xf32> to vector<16x16xf32>
    %267 = arith.subf %265, %266 : vector<16x16xf32>
    %268 = math.absf %267 : vector<16x16xf32>
    %cst_71 = arith.constant 1.000000e+00 : f32
    %269 = vector.broadcast %cst_71 : f32 to vector<16x16xf32>
    %270 = arith.subf %269, %268 : vector<16x16xf32>
    %cst_72 = arith.constant 0.000000e+00 : f32
    %271 = vector.broadcast %cst_72 : f32 to vector<16x16xf32>
    %272 = arith.maximumf %271, %270 : vector<16x16xf32>
    %273 = arith.truncf %264 : vector<16x16xf32> to vector<16x16xbf16>
    %cst_73 = arith.constant dense<0.000000e+00> : vector<48x16xf32>
    %274 = tpu.matmul %158, %273, %cst_73 {dimension_numbers = #tpu.dot_dimension_numbers<[1], [0], [0], [1], [0, 0, 1, 1], [], []>} : vector<48x16xbf16>, vector<16x16xbf16>, vector<48x16xf32> -> vector<48x16xf32>
    %275 = vector.extract_strided_slice %274 {offsets = [0, 0], sizes = [16, 16], strides = [1, 1]} : vector<48x16xf32> to vector<16x16xf32>
    %276 = arith.mulf %275, %272 : vector<16x16xf32>
    %cst_74 = arith.constant dense<0.000000e+00> : vector<16xf32>
    %277 = vector.multi_reduction <add>, %276, %cst_74 [0] : vector<16x16xf32> to vector<16xf32>
    %278 = vector.shape_cast %277 : vector<16xf32> to vector<1x16xf32>
    %279 = vector.extract_strided_slice %274 {offsets = [16, 0], sizes = [16, 16], strides = [1, 1]} : vector<48x16xf32> to vector<16x16xf32>
    %280 = arith.mulf %279, %272 : vector<16x16xf32>
    %cst_75 = arith.constant dense<0.000000e+00> : vector<16xf32>
    %281 = vector.multi_reduction <add>, %280, %cst_75 [0] : vector<16x16xf32> to vector<16xf32>
    %282 = vector.shape_cast %281 : vector<16xf32> to vector<1x16xf32>
    %283 = vector.extract_strided_slice %274 {offsets = [32, 0], sizes = [16, 16], strides = [1, 1]} : vector<48x16xf32> to vector<16x16xf32>
    %284 = arith.mulf %283, %272 : vector<16x16xf32>
    %cst_76 = arith.constant dense<0.000000e+00> : vector<16xf32>
    %285 = vector.multi_reduction <add>, %284, %cst_76 [0] : vector<16x16xf32> to vector<16xf32>
    %286 = vector.shape_cast %285 : vector<16xf32> to vector<1x16xf32>
    %287 = vector.extract_strided_slice %145 {offsets = [4, 0], sizes = [1, 16], strides = [1, 1]} : vector<8x16xf32> to vector<1x16xf32>
    %288 = vector.extract_strided_slice %153 {offsets = [4, 0], sizes = [1, 16], strides = [1, 1]} : vector<8x16xf32> to vector<1x16xf32>
    %289 = vector.broadcast %155 : vector<16x1xf32> to vector<16x16xf32>
    %290 = vector.broadcast %287 : vector<1x16xf32> to vector<16x16xf32>
    %291 = arith.subf %289, %290 : vector<16x16xf32>
    %292 = math.absf %291 : vector<16x16xf32>
    %cst_77 = arith.constant 1.000000e+00 : f32
    %293 = vector.broadcast %cst_77 : f32 to vector<16x16xf32>
    %294 = arith.subf %293, %292 : vector<16x16xf32>
    %cst_78 = arith.constant 0.000000e+00 : f32
    %295 = vector.broadcast %cst_78 : f32 to vector<16x16xf32>
    %296 = arith.maximumf %295, %294 : vector<16x16xf32>
    %297 = vector.broadcast %157 : vector<16x1xf32> to vector<16x16xf32>
    %298 = vector.broadcast %288 : vector<1x16xf32> to vector<16x16xf32>
    %299 = arith.subf %297, %298 : vector<16x16xf32>
    %300 = math.absf %299 : vector<16x16xf32>
    %cst_79 = arith.constant 1.000000e+00 : f32
    %301 = vector.broadcast %cst_79 : f32 to vector<16x16xf32>
    %302 = arith.subf %301, %300 : vector<16x16xf32>
    %cst_80 = arith.constant 0.000000e+00 : f32
    %303 = vector.broadcast %cst_80 : f32 to vector<16x16xf32>
    %304 = arith.maximumf %303, %302 : vector<16x16xf32>
    %305 = arith.truncf %296 : vector<16x16xf32> to vector<16x16xbf16>
    %cst_81 = arith.constant dense<0.000000e+00> : vector<48x16xf32>
    %306 = tpu.matmul %158, %305, %cst_81 {dimension_numbers = #tpu.dot_dimension_numbers<[1], [0], [0], [1], [0, 0, 1, 1], [], []>} : vector<48x16xbf16>, vector<16x16xbf16>, vector<48x16xf32> -> vector<48x16xf32>
    %307 = vector.extract_strided_slice %306 {offsets = [0, 0], sizes = [16, 16], strides = [1, 1]} : vector<48x16xf32> to vector<16x16xf32>
    %308 = arith.mulf %307, %304 : vector<16x16xf32>
    %cst_82 = arith.constant dense<0.000000e+00> : vector<16xf32>
    %309 = vector.multi_reduction <add>, %308, %cst_82 [0] : vector<16x16xf32> to vector<16xf32>
    %310 = vector.shape_cast %309 : vector<16xf32> to vector<1x16xf32>
    %311 = vector.extract_strided_slice %306 {offsets = [16, 0], sizes = [16, 16], strides = [1, 1]} : vector<48x16xf32> to vector<16x16xf32>
    %312 = arith.mulf %311, %304 : vector<16x16xf32>
    %cst_83 = arith.constant dense<0.000000e+00> : vector<16xf32>
    %313 = vector.multi_reduction <add>, %312, %cst_83 [0] : vector<16x16xf32> to vector<16xf32>
    %314 = vector.shape_cast %313 : vector<16xf32> to vector<1x16xf32>
    %315 = vector.extract_strided_slice %306 {offsets = [32, 0], sizes = [16, 16], strides = [1, 1]} : vector<48x16xf32> to vector<16x16xf32>
    %316 = arith.mulf %315, %304 : vector<16x16xf32>
    %cst_84 = arith.constant dense<0.000000e+00> : vector<16xf32>
    %317 = vector.multi_reduction <add>, %316, %cst_84 [0] : vector<16x16xf32> to vector<16xf32>
    %318 = vector.shape_cast %317 : vector<16xf32> to vector<1x16xf32>
    %319 = vector.extract_strided_slice %145 {offsets = [5, 0], sizes = [1, 16], strides = [1, 1]} : vector<8x16xf32> to vector<1x16xf32>
    %320 = vector.extract_strided_slice %153 {offsets = [5, 0], sizes = [1, 16], strides = [1, 1]} : vector<8x16xf32> to vector<1x16xf32>
    %321 = vector.broadcast %155 : vector<16x1xf32> to vector<16x16xf32>
    %322 = vector.broadcast %319 : vector<1x16xf32> to vector<16x16xf32>
    %323 = arith.subf %321, %322 : vector<16x16xf32>
    %324 = math.absf %323 : vector<16x16xf32>
    %cst_85 = arith.constant 1.000000e+00 : f32
    %325 = vector.broadcast %cst_85 : f32 to vector<16x16xf32>
    %326 = arith.subf %325, %324 : vector<16x16xf32>
    %cst_86 = arith.constant 0.000000e+00 : f32
    %327 = vector.broadcast %cst_86 : f32 to vector<16x16xf32>
    %328 = arith.maximumf %327, %326 : vector<16x16xf32>
    %329 = vector.broadcast %157 : vector<16x1xf32> to vector<16x16xf32>
    %330 = vector.broadcast %320 : vector<1x16xf32> to vector<16x16xf32>
    %331 = arith.subf %329, %330 : vector<16x16xf32>
    %332 = math.absf %331 : vector<16x16xf32>
    %cst_87 = arith.constant 1.000000e+00 : f32
    %333 = vector.broadcast %cst_87 : f32 to vector<16x16xf32>
    %334 = arith.subf %333, %332 : vector<16x16xf32>
    %cst_88 = arith.constant 0.000000e+00 : f32
    %335 = vector.broadcast %cst_88 : f32 to vector<16x16xf32>
    %336 = arith.maximumf %335, %334 : vector<16x16xf32>
    %337 = arith.truncf %328 : vector<16x16xf32> to vector<16x16xbf16>
    %cst_89 = arith.constant dense<0.000000e+00> : vector<48x16xf32>
    %338 = tpu.matmul %158, %337, %cst_89 {dimension_numbers = #tpu.dot_dimension_numbers<[1], [0], [0], [1], [0, 0, 1, 1], [], []>} : vector<48x16xbf16>, vector<16x16xbf16>, vector<48x16xf32> -> vector<48x16xf32>
    %339 = vector.extract_strided_slice %338 {offsets = [0, 0], sizes = [16, 16], strides = [1, 1]} : vector<48x16xf32> to vector<16x16xf32>
    %340 = arith.mulf %339, %336 : vector<16x16xf32>
    %cst_90 = arith.constant dense<0.000000e+00> : vector<16xf32>
    %341 = vector.multi_reduction <add>, %340, %cst_90 [0] : vector<16x16xf32> to vector<16xf32>
    %342 = vector.shape_cast %341 : vector<16xf32> to vector<1x16xf32>
    %343 = vector.extract_strided_slice %338 {offsets = [16, 0], sizes = [16, 16], strides = [1, 1]} : vector<48x16xf32> to vector<16x16xf32>
    %344 = arith.mulf %343, %336 : vector<16x16xf32>
    %cst_91 = arith.constant dense<0.000000e+00> : vector<16xf32>
    %345 = vector.multi_reduction <add>, %344, %cst_91 [0] : vector<16x16xf32> to vector<16xf32>
    %346 = vector.shape_cast %345 : vector<16xf32> to vector<1x16xf32>
    %347 = vector.extract_strided_slice %338 {offsets = [32, 0], sizes = [16, 16], strides = [1, 1]} : vector<48x16xf32> to vector<16x16xf32>
    %348 = arith.mulf %347, %336 : vector<16x16xf32>
    %cst_92 = arith.constant dense<0.000000e+00> : vector<16xf32>
    %349 = vector.multi_reduction <add>, %348, %cst_92 [0] : vector<16x16xf32> to vector<16xf32>
    %350 = vector.shape_cast %349 : vector<16xf32> to vector<1x16xf32>
    %351 = vector.extract_strided_slice %145 {offsets = [6, 0], sizes = [1, 16], strides = [1, 1]} : vector<8x16xf32> to vector<1x16xf32>
    %352 = vector.extract_strided_slice %153 {offsets = [6, 0], sizes = [1, 16], strides = [1, 1]} : vector<8x16xf32> to vector<1x16xf32>
    %353 = vector.broadcast %155 : vector<16x1xf32> to vector<16x16xf32>
    %354 = vector.broadcast %351 : vector<1x16xf32> to vector<16x16xf32>
    %355 = arith.subf %353, %354 : vector<16x16xf32>
    %356 = math.absf %355 : vector<16x16xf32>
    %cst_93 = arith.constant 1.000000e+00 : f32
    %357 = vector.broadcast %cst_93 : f32 to vector<16x16xf32>
    %358 = arith.subf %357, %356 : vector<16x16xf32>
    %cst_94 = arith.constant 0.000000e+00 : f32
    %359 = vector.broadcast %cst_94 : f32 to vector<16x16xf32>
    %360 = arith.maximumf %359, %358 : vector<16x16xf32>
    %361 = vector.broadcast %157 : vector<16x1xf32> to vector<16x16xf32>
    %362 = vector.broadcast %352 : vector<1x16xf32> to vector<16x16xf32>
    %363 = arith.subf %361, %362 : vector<16x16xf32>
    %364 = math.absf %363 : vector<16x16xf32>
    %cst_95 = arith.constant 1.000000e+00 : f32
    %365 = vector.broadcast %cst_95 : f32 to vector<16x16xf32>
    %366 = arith.subf %365, %364 : vector<16x16xf32>
    %cst_96 = arith.constant 0.000000e+00 : f32
    %367 = vector.broadcast %cst_96 : f32 to vector<16x16xf32>
    %368 = arith.maximumf %367, %366 : vector<16x16xf32>
    %369 = arith.truncf %360 : vector<16x16xf32> to vector<16x16xbf16>
    %cst_97 = arith.constant dense<0.000000e+00> : vector<48x16xf32>
    %370 = tpu.matmul %158, %369, %cst_97 {dimension_numbers = #tpu.dot_dimension_numbers<[1], [0], [0], [1], [0, 0, 1, 1], [], []>} : vector<48x16xbf16>, vector<16x16xbf16>, vector<48x16xf32> -> vector<48x16xf32>
    %371 = vector.extract_strided_slice %370 {offsets = [0, 0], sizes = [16, 16], strides = [1, 1]} : vector<48x16xf32> to vector<16x16xf32>
    %372 = arith.mulf %371, %368 : vector<16x16xf32>
    %cst_98 = arith.constant dense<0.000000e+00> : vector<16xf32>
    %373 = vector.multi_reduction <add>, %372, %cst_98 [0] : vector<16x16xf32> to vector<16xf32>
    %374 = vector.shape_cast %373 : vector<16xf32> to vector<1x16xf32>
    %375 = vector.extract_strided_slice %370 {offsets = [16, 0], sizes = [16, 16], strides = [1, 1]} : vector<48x16xf32> to vector<16x16xf32>
    %376 = arith.mulf %375, %368 : vector<16x16xf32>
    %cst_99 = arith.constant dense<0.000000e+00> : vector<16xf32>
    %377 = vector.multi_reduction <add>, %376, %cst_99 [0] : vector<16x16xf32> to vector<16xf32>
    %378 = vector.shape_cast %377 : vector<16xf32> to vector<1x16xf32>
    %379 = vector.extract_strided_slice %370 {offsets = [32, 0], sizes = [16, 16], strides = [1, 1]} : vector<48x16xf32> to vector<16x16xf32>
    %380 = arith.mulf %379, %368 : vector<16x16xf32>
    %cst_100 = arith.constant dense<0.000000e+00> : vector<16xf32>
    %381 = vector.multi_reduction <add>, %380, %cst_100 [0] : vector<16x16xf32> to vector<16xf32>
    %382 = vector.shape_cast %381 : vector<16xf32> to vector<1x16xf32>
    %383 = vector.extract_strided_slice %145 {offsets = [7, 0], sizes = [1, 16], strides = [1, 1]} : vector<8x16xf32> to vector<1x16xf32>
    %384 = vector.extract_strided_slice %153 {offsets = [7, 0], sizes = [1, 16], strides = [1, 1]} : vector<8x16xf32> to vector<1x16xf32>
    %385 = vector.broadcast %155 : vector<16x1xf32> to vector<16x16xf32>
    %386 = vector.broadcast %383 : vector<1x16xf32> to vector<16x16xf32>
    %387 = arith.subf %385, %386 : vector<16x16xf32>
    %388 = math.absf %387 : vector<16x16xf32>
    %cst_101 = arith.constant 1.000000e+00 : f32
    %389 = vector.broadcast %cst_101 : f32 to vector<16x16xf32>
    %390 = arith.subf %389, %388 : vector<16x16xf32>
    %cst_102 = arith.constant 0.000000e+00 : f32
    %391 = vector.broadcast %cst_102 : f32 to vector<16x16xf32>
    %392 = arith.maximumf %391, %390 : vector<16x16xf32>
    %393 = vector.broadcast %157 : vector<16x1xf32> to vector<16x16xf32>
    %394 = vector.broadcast %384 : vector<1x16xf32> to vector<16x16xf32>
    %395 = arith.subf %393, %394 : vector<16x16xf32>
    %396 = math.absf %395 : vector<16x16xf32>
    %cst_103 = arith.constant 1.000000e+00 : f32
    %397 = vector.broadcast %cst_103 : f32 to vector<16x16xf32>
    %398 = arith.subf %397, %396 : vector<16x16xf32>
    %cst_104 = arith.constant 0.000000e+00 : f32
    %399 = vector.broadcast %cst_104 : f32 to vector<16x16xf32>
    %400 = arith.maximumf %399, %398 : vector<16x16xf32>
    %401 = arith.truncf %392 : vector<16x16xf32> to vector<16x16xbf16>
    %cst_105 = arith.constant dense<0.000000e+00> : vector<48x16xf32>
    %402 = tpu.matmul %158, %401, %cst_105 {dimension_numbers = #tpu.dot_dimension_numbers<[1], [0], [0], [1], [0, 0, 1, 1], [], []>} : vector<48x16xbf16>, vector<16x16xbf16>, vector<48x16xf32> -> vector<48x16xf32>
    %403 = vector.extract_strided_slice %402 {offsets = [0, 0], sizes = [16, 16], strides = [1, 1]} : vector<48x16xf32> to vector<16x16xf32>
    %404 = arith.mulf %403, %400 : vector<16x16xf32>
    %cst_106 = arith.constant dense<0.000000e+00> : vector<16xf32>
    %405 = vector.multi_reduction <add>, %404, %cst_106 [0] : vector<16x16xf32> to vector<16xf32>
    %406 = vector.shape_cast %405 : vector<16xf32> to vector<1x16xf32>
    %407 = vector.extract_strided_slice %402 {offsets = [16, 0], sizes = [16, 16], strides = [1, 1]} : vector<48x16xf32> to vector<16x16xf32>
    %408 = arith.mulf %407, %400 : vector<16x16xf32>
    %cst_107 = arith.constant dense<0.000000e+00> : vector<16xf32>
    %409 = vector.multi_reduction <add>, %408, %cst_107 [0] : vector<16x16xf32> to vector<16xf32>
    %410 = vector.shape_cast %409 : vector<16xf32> to vector<1x16xf32>
    %411 = vector.extract_strided_slice %402 {offsets = [32, 0], sizes = [16, 16], strides = [1, 1]} : vector<48x16xf32> to vector<16x16xf32>
    %412 = arith.mulf %411, %400 : vector<16x16xf32>
    %cst_108 = arith.constant dense<0.000000e+00> : vector<16xf32>
    %413 = vector.multi_reduction <add>, %412, %cst_108 [0] : vector<16x16xf32> to vector<16xf32>
    %414 = vector.shape_cast %413 : vector<16xf32> to vector<1x16xf32>
    %c0_109 = arith.constant 0 : index
    %c0_110 = arith.constant 0 : index
    %c0_111 = arith.constant 0 : index
    %415 = vector.load %arg8[%c0_109, %c0_110, %c0_111] : memref<3x8x16xf32, #tpu.memory_space<vmem>>, vector<1x8x16xf32>
    %416 = vector.shape_cast %415 : vector<1x8x16xf32> to vector<8x16xf32>
    %417 = tpu.concatenate %182, %214, %246, %278, %310, %342, %374, %406 in 0 : vector<1x16xf32>, vector<1x16xf32>, vector<1x16xf32>, vector<1x16xf32>, vector<1x16xf32>, vector<1x16xf32>, vector<1x16xf32>, vector<1x16xf32> -> vector<8x16xf32>
    %418 = arith.addf %416, %417 : vector<8x16xf32>
    %c0_112 = arith.constant 0 : index
    %c0_113 = arith.constant 0 : index
    %c0_114 = arith.constant 0 : index
    %419 = vector.load %arg8[%c0_112, %c0_113, %c0_114] : memref<3x8x16xf32, #tpu.memory_space<vmem>>, vector<1x8x16xf32>
    %420 = vector.shape_cast %419 : vector<1x8x16xf32> to vector<8x16xf32>
    %421 = vector.shape_cast %418 : vector<8x16xf32> to vector<1x8x16xf32>
    tpu.vector_store %arg8[%c0_112, %c0_113, %c0_114], %421 {strides = array<i32>} : memref<3x8x16xf32, #tpu.memory_space<vmem>>, vector<1x8x16xf32>,
    %c1 = arith.constant 1 : index
    %c0_115 = arith.constant 0 : index
    %c0_116 = arith.constant 0 : index
    %422 = vector.load %arg8[%c1, %c0_115, %c0_116] : memref<3x8x16xf32, #tpu.memory_space<vmem>>, vector<1x8x16xf32>
    %423 = vector.shape_cast %422 : vector<1x8x16xf32> to vector<8x16xf32>
    %424 = tpu.concatenate %186, %218, %250, %282, %314, %346, %378, %410 in 0 : vector<1x16xf32>, vector<1x16xf32>, vector<1x16xf32>, vector<1x16xf32>, vector<1x16xf32>, vector<1x16xf32>, vector<1x16xf32>, vector<1x16xf32> -> vector<8x16xf32>
    %425 = arith.addf %423, %424 : vector<8x16xf32>
    %c1_117 = arith.constant 1 : index
    %c0_118 = arith.constant 0 : index
    %c0_119 = arith.constant 0 : index
    %426 = vector.load %arg8[%c1_117, %c0_118, %c0_119] : memref<3x8x16xf32, #tpu.memory_space<vmem>>, vector<1x8x16xf32>
    %427 = vector.shape_cast %426 : vector<1x8x16xf32> to vector<8x16xf32>
    %428 = vector.shape_cast %425 : vector<8x16xf32> to vector<1x8x16xf32>
    tpu.vector_store %arg8[%c1_117, %c0_118, %c0_119], %428 {strides = array<i32>} : memref<3x8x16xf32, #tpu.memory_space<vmem>>, vector<1x8x16xf32>,
    %c2 = arith.constant 2 : index
    %c0_120 = arith.constant 0 : index
    %c0_121 = arith.constant 0 : index
    %429 = vector.load %arg8[%c2, %c0_120, %c0_121] : memref<3x8x16xf32, #tpu.memory_space<vmem>>, vector<1x8x16xf32>
    %430 = vector.shape_cast %429 : vector<1x8x16xf32> to vector<8x16xf32>
    %431 = tpu.concatenate %190, %222, %254, %286, %318, %350, %382, %414 in 0 : vector<1x16xf32>, vector<1x16xf32>, vector<1x16xf32>, vector<1x16xf32>, vector<1x16xf32>, vector<1x16xf32>, vector<1x16xf32>, vector<1x16xf32> -> vector<8x16xf32>
    %432 = arith.addf %430, %431 : vector<8x16xf32>
    %c2_122 = arith.constant 2 : index
    %c0_123 = arith.constant 0 : index
    %c0_124 = arith.constant 0 : index
    %433 = vector.load %arg8[%c2_122, %c0_123, %c0_124] : memref<3x8x16xf32, #tpu.memory_space<vmem>>, vector<1x8x16xf32>
    %434 = vector.shape_cast %433 : vector<1x8x16xf32> to vector<8x16xf32>
    %435 = vector.shape_cast %432 : vector<8x16xf32> to vector<1x8x16xf32>
    tpu.vector_store %arg8[%c2_122, %c0_123, %c0_124], %435 {strides = array<i32>} : memref<3x8x16xf32, #tpu.memory_space<vmem>>, vector<1x8x16xf32>,
    %c8_i32_125 = arith.constant 8 : i32
    %436 = arith.cmpi eq, %arg1, %c8_i32_125 : i32
    %437 = arith.extui %436 : i1 to i32
    %c0_i32_126 = arith.constant 0 : i32
    %438 = arith.cmpi ne, %437, %c0_i32_126 : i32
    scf.if %438 {
      %c0_127 = arith.constant 0 : index
      %c0_128 = arith.constant 0 : index
      %c0_129 = arith.constant 0 : index
      %439 = vector.load %arg8[%c0_127, %c0_128, %c0_129] : memref<3x8x16xf32, #tpu.memory_space<vmem>>, vector<3x8x16xf32>
      %cst_130 = arith.constant 0.111111112 : f32
      %440 = vector.broadcast %cst_130 : f32 to vector<3x8x16xf32>
      %441 = arith.mulf %439, %440 : vector<3x8x16xf32>
      %c0_131 = arith.constant 0 : index
      %c0_132 = arith.constant 0 : index
      %c0_133 = arith.constant 0 : index
      %442 = vector.load %arg8[%c0_131, %c0_132, %c0_133] : memref<3x8x16xf32, #tpu.memory_space<vmem>>, vector<3x8x16xf32>
      tpu.vector_store %arg8[%c0_131, %c0_132, %c0_133], %441 {strides = array<i32>} : memref<3x8x16xf32, #tpu.memory_space<vmem>>, vector<3x8x16xf32>,
    } else {
    }
    return
  }
  func.func @transform_0(%arg0: i32, %arg1: i32) -> i32 {
    %c0_i32 = arith.constant 0 : i32
    %c0_i32_0 = arith.constant 0 : i32
    return %c0_i32 : i32
  }
  func.func @transform_1(%arg0: i32, %arg1: i32) -> (i32, i32) {
    %c0_i32 = arith.constant 0 : i32
    %c0_i32_0 = arith.constant 0 : i32
    %c0_i32_1 = arith.constant 0 : i32
    return %c0_i32, %c0_i32_0 : i32, i32
  }
  func.func @transform_2(%arg0: i32, %arg1: i32) -> (i32, i32) {
    %c0_i32 = arith.constant 0 : i32
    %c0_i32_0 = arith.constant 0 : i32
    %c0_i32_1 = arith.constant 0 : i32
    return %c0_i32, %c0_i32_0 : i32, i32
  }
  func.func @transform_3(%arg0: i32, %arg1: i32) -> (i32, i32) {
    %c0_i32 = arith.constant 0 : i32
    %c0_i32_0 = arith.constant 0 : i32
    return %arg0, %c0_i32 : i32, i32
  }
  func.func @transform_4(%arg0: i32, %arg1: i32) -> (i32, i32) {
    %c0_i32 = arith.constant 0 : i32
    %c0_i32_0 = arith.constant 0 : i32
    return %arg0, %c0_i32 : i32, i32
  }
  func.func @transform_5(%arg0: i32, %arg1: i32) -> (i32, i32) {
    %c0_i32 = arith.constant 0 : i32
    %c0_i32_0 = arith.constant 0 : i32
    %c0_i32_1 = arith.constant 0 : i32
    return %c0_i32, %c0_i32_0 : i32, i32
  }
  func.func @transform_6(%arg0: i32, %arg1: i32) -> (i32, i32, i32) {
    %c0_i32 = arith.constant 0 : i32
    %c0_i32_0 = arith.constant 0 : i32
    %c0_i32_1 = arith.constant 0 : i32
    return %c0_i32, %arg0, %c0_i32_0 : i32, i32, i32
  }
}

</mosaic_0001>

<llo_original>
// kernel: tpu_custom_call.1
$region0: #{tpu_custom_call.1}
  #allocation0 [shape = 'u32[]', space=smem, size = 0x4, offset = 0x4, fixed_abs, tag = 'smem constant byte address 0x4 - core index']
  #allocation1 [shape = 'u32[72,128]{1,0:T(1,128)}', space=vmem, size = 0x9000, scoped, tag = 'internal scratch']
  %s0 = inlined_call_operand.vmem [shape: f32[81], index: 0, kind: input, shape index: {}]
  %s1 = inlined_call_operand.vmem [shape: f32[18,18], index: 1, kind: input, shape index: {}]
  %s2 = inlined_call_operand.hbm [shape: f32[18,18], index: 2, kind: input, shape index: {}]
  %s3 = inlined_call_operand.hbm [shape: f32[16,16], index: 3, kind: input, shape index: {}]
  %s4 = inlined_call_operand.hbm [shape: f32[16,16], index: 4, kind: input, shape index: {}]
  %s5 = inlined_call_operand.vmem [shape: bf16[48,16], index: 5, kind: input, shape index: {}]
  %s6 = inlined_call_operand.hbm [shape: f32[3,16,16], index: 6, kind: output, shape index: {}]
  %s7 = sld [smem:[#allocation0]]
  $region81: #{tpu_custom_call.1} parent=0
    _
  %s9 = ssub.s32 1, %s7
  %s10 = scalar_select 0, %s9, %s7
  $region1: #{tpu_custom_call.1} parent=0
    #allocation2 [shape = 'u8[512]{0}', space=smem, size = 0x200, scoped, tag = 'input window, operand 0, single buffered']
    #allocation3 [shape = 's32[2]{0}', space=sflag, size = 0x8, scoped, tag = 'scoped memory for tpu_custom_call.1']
    #allocation4 [shape = 's32[2]{0}', space=sflag, size = 0x8, scoped, tag = 'scoped memory for tpu_custom_call.1']
    #allocation5 [shape = 's32[2]{0}', space=sflag, size = 0x8, scoped, tag = 'scoped memory for tpu_custom_call.1']
    #allocation6 [shape = 'u8[12288]{0}', space=vmem, size = 0x3000, scoped, tag = 'input window, operand 2, single buffered']
    #allocation7 [shape = 'u8[8192]{0}', space=vmem, size = 0x2000, scoped, tag = 'input window, operand 3']
    #allocation8 [shape = 's32[2]{0}', space=sflag, size = 0x8, scoped, tag = 'scoped memory for tpu_custom_call.1']
    #allocation9 [shape = 'u8[8192]{0}', space=vmem, size = 0x2000, scoped, tag = 'input window, operand 4']
    #allocation10 [shape = 'u8[24576]{0}', space=vmem, size = 0x6000, scoped, tag = 'output window, operand 0']
    %11 = vsyncpa [#allocation5], 0
    %12 = vsyncpa [#allocation3], 0
    %13 = vsyncpa [#allocation8], 0
    %s14 = scalar_lea.sflag [#allocation8], 1
    %15 = vsyncpa %s14, 0
    %16 = vsyncpa [#allocation4], 0
    %s17 = scalar_lea.sflag [#allocation4], 1
    %18 = vsyncpa %s17, 0
    loop: start=0, step=1, limit=20
    $region2: #{tpu_custom_call.1} parent=1 // loop_pre_header
      _
    $region3: #{tpu_custom_call.1} parent=1 // loop_header
      %s20 = sphi 0, %s24
      %p21 = scmp.ge.s32.totalorder %s20, 20
      %s27 = sphi 0, %s39
      %s28 = sphi 0, %s35
      %s29 = sphi 0, %s27
      %s30 = sphi 0, %s28
      %s31 = sphi 0, %s29
      %s32 = sphi 0, %s30
      %s40 = sphi 0, %s40
      %s42 = sphi 0, %s40
      %s43 = sphi 0, %s42
      %s57 = sphi 0, %s43
      %s61 = sphi 0, %s61
      %s63 = sphi 0, %s61
      %s64 = sphi 0, %s63
      %s78 = sphi 0, %s64
      %s82 = sphi 0, %s82
      %s84 = sphi 0, %s82
      %s85 = sphi 0, %s84
      %s99 = sphi 0, %s85
      %s105 = sphi 0, %s107
      %s108 = sphi 0, %s105
      %s109 = sphi 0, %s108
      %s125 = sphi 0, %s109
      %s131 = sphi 0, %s133
      %s134 = sphi 0, %s131
      %s135 = sphi 0, %s134
      %s151 = sphi 0, %s135
      %s155 = sphi 0, %s155
      %s157 = sphi 0, %s155
      %s158 = sphi 0, %s157
      %s172 = sphi 0, %s158
      %s178 = sphi 0, %s180
      %s181 = sphi 0, %s178
      %s182 = sphi 0, %s181
      %s198 = sphi 0, %s182
    $region4: #{tpu_custom_call.1} parent=1 // loop_header_branch
      %23 = sbr.rel (%p21) target = $region8
    $region5: #{tpu_custom_call.1} parent=1 // loop_body
      %s25 = ssub.s32 %s20, 1
      %s26 = ssub.s32 %s20, 2
      %s33 = sadd.s32 1, %s28
      %p34 = scmp.ge.s32.totalorder %s33, 9
      %s35 = scalar_select %p34, 0, %s33
      %s36 = sadd.s32 1, %s27
      %s37 = scalar_select %p34, %s36, %s27
      %p38 = scmp.ge.s32.totalorder %s37, 2
      %s39 = scalar_select %p38, 0, %s37
      %s41 = sadd.s32 %s40, 1
      %p44 = scmp.eq.s32.totalorder %s20, 17
      %p45 = scmp.ne.s32.totalorder %s40, %s42
      %p46 = scmp.eq.s32.totalorder %s20, 0
      %p47 = por %p45, %p46
      %p48 = scmp.ne.s32.totalorder %s40, %s42
      %p49 = scmp.eq.s32.totalorder %s25, 17
      %p50 = por %p48, %p49
      %p51 = scmp.ne.s32.totalorder %s42, %s43
      %p52 = scmp.eq.s32.totalorder %s25, 0
      %p53 = por %p51, %p52
      %p54 = scmp.ne.s32.totalorder %s42, %s43
      %p55 = scmp.eq.s32.totalorder %s26, 17
      %p56 = por %p54, %p55
      %p58 = scmp.ne.s32.totalorder %s43, %s57
      %p59 = scmp.eq.s32.totalorder %s26, 0
      %p60 = por %p58, %p59
      %s62 = sadd.s32 %s61, 1
      %p65 = scmp.eq.s32.totalorder %s20, 17
      %p66 = scmp.ne.s32.totalorder %s61, %s63
      %p67 = scmp.eq.s32.totalorder %s20, 0
      %p68 = por %p66, %p67
      %p69 = scmp.ne.s32.totalorder %s61, %s63
      %p70 = scmp.eq.s32.totalorder %s25, 17
      %p71 = por %p69, %p70
      %p72 = scmp.ne.s32.totalorder %s63, %s64
      %p73 = scmp.eq.s32.totalorder %s25, 0
      %p74 = por %p72, %p73
      %p75 = scmp.ne.s32.totalorder %s63, %s64
      %p76 = scmp.eq.s32.totalorder %s26, 17
      %p77 = por %p75, %p76
      %p79 = scmp.ne.s32.totalorder %s64, %s78
      %p80 = scmp.eq.s32.totalorder %s26, 0
      %p81 = por %p79, %p80
      %s83 = sadd.s32 %s82, 1
      %p86 = scmp.eq.s32.totalorder %s20, 17
      %p87 = scmp.ne.s32.totalorder %s82, %s84
      %p88 = scmp.eq.s32.totalorder %s20, 0
      %p89 = por %p87, %p88
      %p90 = scmp.ne.s32.totalorder %s82, %s84
      %p91 = scmp.eq.s32.totalorder %s25, 17
      %p92 = por %p90, %p91
      %p93 = scmp.ne.s32.totalorder %s84, %s85
      %p94 = scmp.eq.s32.totalorder %s25, 0
      %p95 = por %p93, %p94
      %p96 = scmp.ne.s32.totalorder %s84, %s85
      %p97 = scmp.eq.s32.totalorder %s26, 17
      %p98 = por %p96, %p97
      %p100 = scmp.ne.s32.totalorder %s85, %s99
      %p101 = scmp.eq.s32.totalorder %s26, 0
      %p102 = por %p100, %p101
      %s103 = ssub.s32 %s27, %s39
      %p104 = scmp.eq.s32.totalorder %s103, 0
      %s106 = sadd.s32 %s105, 1
      %s107 = scalar_select %p104, %s105, %s106
      %p110 = pneg %p104
      %p111 = scmp.eq.s32.totalorder %s20, 17
      %p112 = por %p110, %p111
      %p113 = scmp.ne.s32.totalorder %s105, %s108
      %p114 = scmp.eq.s32.totalorder %s20, 0
      %p115 = por %p113, %p114
      %p116 = scmp.ne.s32.totalorder %s105, %s108
      %p117 = scmp.eq.s32.totalorder %s25, 17
      %p118 = por %p116, %p117
      %p119 = scmp.ne.s32.totalorder %s108, %s109
      %p120 = scmp.eq.s32.totalorder %s25, 0
      %p121 = por %p119, %p120
      %p122 = scmp.ne.s32.totalorder %s108, %s109
      %p123 = scmp.eq.s32.totalorder %s26, 17
      %p124 = por %p122, %p123
      %p126 = scmp.ne.s32.totalorder %s109, %s125
      %p127 = scmp.eq.s32.totalorder %s26, 0
      %p128 = por %p126, %p127
      %s129 = ssub.s32 %s27, %s39
      %p130 = scmp.eq.s32.totalorder %s129, 0
      %s132 = sadd.s32 %s131, 1
      %s133 = scalar_select %p130, %s131, %s132
      %p136 = pneg %p130
      %p137 = scmp.eq.s32.totalorder %s20, 17
      %p138 = por %p136, %p137
      %p139 = scmp.ne.s32.totalorder %s131, %s134
      %p140 = scmp.eq.s32.totalorder %s20, 0
      %p141 = por %p139, %p140
      %p142 = scmp.ne.s32.totalorder %s131, %s134
      %p143 = scmp.eq.s32.totalorder %s25, 17
      %p144 = por %p142, %p143
      %p145 = scmp.ne.s32.totalorder %s134, %s135
      %p146 = scmp.eq.s32.totalorder %s25, 0
      %p147 = por %p145, %p146
      %p148 = scmp.ne.s32.totalorder %s134, %s135
      %p149 = scmp.eq.s32.totalorder %s26, 17
      %p150 = por %p148, %p149
      %p152 = scmp.ne.s32.totalorder %s135, %s151
      %p153 = scmp.eq.s32.totalorder %s26, 0
      %p154 = por %p152, %p153
      %s156 = sadd.s32 %s155, 1
      %p159 = scmp.eq.s32.totalorder %s20, 17
      %p160 = scmp.ne.s32.totalorder %s155, %s157
      %p161 = scmp.eq.s32.totalorder %s20, 0
      %p162 = por %p160, %p161
      %p163 = scmp.ne.s32.totalorder %s155, %s157
      %p164 = scmp.eq.s32.totalorder %s25, 17
      %p165 = por %p163, %p164
      %p166 = scmp.ne.s32.totalorder %s157, %s158
      %p167 = scmp.eq.s32.totalorder %s25, 0
      %p168 = por %p166, %p167
      %p169 = scmp.ne.s32.totalorder %s157, %s158
      %p170 = scmp.eq.s32.totalorder %s26, 17
      %p171 = por %p169, %p170
      %p173 = scmp.ne.s32.totalorder %s158, %s172
      %p174 = scmp.eq.s32.totalorder %s26, 0
      %p175 = por %p173, %p174
      %s176 = ssub.s32 %s27, %s39
      %p177 = scmp.eq.s32.totalorder %s176, 0
      %s179 = sadd.s32 %s178, 1
      %s180 = scalar_select %p177, %s178, %s179
      %p183 = pneg %p177
      %p184 = scmp.eq.s32.totalorder %s20, 17
      %p185 = por %p183, %p184
      %p186 = scmp.ne.s32.totalorder %s178, %s181
      %p187 = scmp.eq.s32.totalorder %s20, 0
      %p188 = por %p186, %p187
      %p189 = scmp.ne.s32.totalorder %s178, %s181
      %p190 = scmp.eq.s32.totalorder %s25, 17
      %p191 = por %p189, %p190
      %p192 = scmp.ne.s32.totalorder %s181, %s182
      %p193 = scmp.eq.s32.totalorder %s25, 0
      %p194 = por %p192, %p193
      %p195 = scmp.ne.s32.totalorder %s181, %s182
      %p196 = scmp.eq.s32.totalorder %s26, 17
      %p197 = por %p195, %p196
      %p199 = scmp.ne.s32.totalorder %s182, %s198
      %p200 = scmp.eq.s32.totalorder %s26, 0
      %p201 = por %p199, %p200
      %p202 = scmp.le.s32.totalorder 1, %s20
      %p203 = scmp.lt.s32.totalorder %s20, 19
      %p204 = pnand %p202, %p203
      %p205 = pneg %p204
      // Predicated region
      $region9: #{tpu_custom_call.1} parent=5 // pred_check
        _
      $region10: #{tpu_custom_call.1} parent=5 // pred_check_branch
        %207 = sbr.rel (%p204) target = $region12
      $region11: #{tpu_custom_call.1} parent=5 // pred_region
        %s208 = ssub.s32 %s20, 1
        // Predicated region
        $region13: #{tpu_custom_call.1} parent=11 // pred_check
          %p209 = pneg %p53
        $region14: #{tpu_custom_call.1} parent=11 // pred_check_branch
          %211 = sbr.rel (%p209) target = $region16
        $region15: #{tpu_custom_call.1} parent=11 // pred_region
          %213 = vsyncadd [#allocation5], 0
          %s215 = sshll.u32 %s0, 4
          %s216 = int_to_ptr.vmem [resolvable:$true] %s215
          %218 = dma.vmem_to_smem %s216, 16, [#allocation2], [#allocation5]
        $region16: #{tpu_custom_call.1} parent=11 // pred_fallthru
          _
        // Predicated region
        $region17: #{tpu_custom_call.1} parent=11 // pred_check
          %p219 = pneg %p74
        $region18: #{tpu_custom_call.1} parent=11 // pred_check_branch
          %221 = sbr.rel (%p219) target = $region20
        $region19: #{tpu_custom_call.1} parent=11 // pred_region
          _
        $region20: #{tpu_custom_call.1} parent=11 // pred_fallthru
          _
        // Predicated region
        $region21: #{tpu_custom_call.1} parent=11 // pred_check
          %p222 = pneg %p95
        $region22: #{tpu_custom_call.1} parent=11 // pred_check_branch
          %224 = sbr.rel (%p222) target = $region24
        $region23: #{tpu_custom_call.1} parent=11 // pred_region
          %226 = vsyncadd [#allocation3], 0
          %s227 = sshll.u32 %s2, 4
          %s228 = int_to_ptr.hbm [resolvable:$true] %s227
          %s229 = sshll.u32 [#allocation6], 4
          %s230 = int_to_ptr.vmem [resolvable:$true] %s229
          %235 = dma.hbm_to_vmem [thread:$0]  %s228, 384, %s230, [#allocation3], 128, 128, 8
        $region24: #{tpu_custom_call.1} parent=11 // pred_fallthru
          _
        // Predicated region
        $region25: #{tpu_custom_call.1} parent=11 // pred_check
          %p236 = pneg %p168
        $region26: #{tpu_custom_call.1} parent=11 // pred_check_branch
          %238 = sbr.rel (%p236) target = $region28
        $region27: #{tpu_custom_call.1} parent=11 // pred_region
          _
        $region28: #{tpu_custom_call.1} parent=11 // pred_fallthru
          _
      $region12: #{tpu_custom_call.1} parent=5 // pred_fallthru
        _
      %p239 = scmp.lt.s32.totalorder %s20, 18
      // Predicated region
      $region29: #{tpu_custom_call.1} parent=5 // pred_check
        %p240 = pneg %p239
      $region30: #{tpu_custom_call.1} parent=5 // pred_check_branch
        %242 = sbr.rel (%p240) target = $region32
      $region31: #{tpu_custom_call.1} parent=5 // pred_region
        // Predicated region
        $region33: #{tpu_custom_call.1} parent=31 // pred_check
          %p243 = pneg %p115
        $region34: #{tpu_custom_call.1} parent=31 // pred_check_branch
          %245 = sbr.rel (%p243) target = $region36
        $region35: #{tpu_custom_call.1} parent=31 // pred_region
          %s246 = sand.u32 %s20, 1
          %s247 = scalar_lea.sflag [#allocation8], %s246
          %s248 = sand.u32 %s105, 1
          %s249 = smul.addr %s248, 8
          %s250 = scalar_lea.vmem [#allocation7], %s249
          %252 = vsyncadd %s247, 0
          %s253 = smul.addr %s27, 8
          %s254 = scalar_lea.hbm %s3, %s253
          %s256 = sshll.u32 %s254, 4
          %s257 = int_to_ptr.hbm [resolvable:$true] %s256
          %s258 = sshll.u32 %s250, 4
          %s259 = int_to_ptr.vmem [resolvable:$true] %s258
          %261 = dma.hbm_to_vmem [thread:$0]  %s257, 128, %s259, %s247
        $region36: #{tpu_custom_call.1} parent=31 // pred_fallthru
          _
        // Predicated region
        $region37: #{tpu_custom_call.1} parent=31 // pred_check
          %p262 = pneg %p141
        $region38: #{tpu_custom_call.1} parent=31 // pred_check_branch
          %264 = sbr.rel (%p262) target = $region40
        $region39: #{tpu_custom_call.1} parent=31 // pred_region
          %s265 = sand.u32 %s20, 1
          %s266 = scalar_lea.sflag [#allocation8], %s265
          %s267 = sand.u32 %s131, 1
          %s268 = smul.addr %s267, 8
          %s269 = scalar_lea.vmem [#allocation9], %s268
          %271 = vsyncadd %s266, 0
          %s272 = smul.addr %s27, 8
          %s273 = scalar_lea.hbm %s4, %s272
          %s275 = sshll.u32 %s273, 4
          %s276 = int_to_ptr.hbm [resolvable:$true] %s275
          %s277 = sshll.u32 %s269, 4
          %s278 = int_to_ptr.vmem [resolvable:$true] %s277
          %280 = dma.hbm_to_vmem [thread:$0]  %s276, 128, %s278, %s266
        $region40: #{tpu_custom_call.1} parent=31 // pred_fallthru
          _
      $region32: #{tpu_custom_call.1} parent=5 // pred_fallthru
        _
      %p281 = scmp.le.s32.totalorder 1, %s20
      %p282 = scmp.lt.s32.totalorder %s20, 19
      %p283 = pnand %p281, %p282
      %p284 = pneg %p283
      // Predicated region
      $region41: #{tpu_custom_call.1} parent=5 // pred_check
        _
      $region42: #{tpu_custom_call.1} parent=5 // pred_check_branch
        %286 = sbr.rel (%p283) target = $region44
      $region43: #{tpu_custom_call.1} parent=5 // pred_region
        %s287 = ssub.s32 %s20, 1
        // Predicated region
        $region45: #{tpu_custom_call.1} parent=43 // pred_check
          %p288 = pneg %p53
        $region46: #{tpu_custom_call.1} parent=43 // pred_check_branch
          %290 = sbr.rel (%p288) target = $region48
        $region47: #{tpu_custom_call.1} parent=43 // pred_region
          %292 = dma.done [#allocation5], 16
        $region48: #{tpu_custom_call.1} parent=43 // pred_fallthru
          _
        // Predicated region
        $region49: #{tpu_custom_call.1} parent=43 // pred_check
          %p293 = pneg %p95
        $region50: #{tpu_custom_call.1} parent=43 // pred_check_branch
          %295 = sbr.rel (%p293) target = $region52
        $region51: #{tpu_custom_call.1} parent=43 // pred_region
          %297 = dma.done [#allocation3], 384
        $region52: #{tpu_custom_call.1} parent=43 // pred_fallthru
          _
        %s298 = sand.u32 %s25, 1
        %s299 = scalar_lea.sflag [#allocation8], %s298
        %s300 = sand.u32 %s108, 1
        %s301 = smul.addr %s300, 8
        %s302 = scalar_lea.vmem [#allocation7], %s301
        // Predicated region
        $region53: #{tpu_custom_call.1} parent=43 // pred_check
          %p303 = pneg %p121
        $region54: #{tpu_custom_call.1} parent=43 // pred_check_branch
          %305 = sbr.rel (%p303) target = $region56
        $region55: #{tpu_custom_call.1} parent=43 // pred_region
          %307 = dma.done %s299, 128
        $region56: #{tpu_custom_call.1} parent=43 // pred_fallthru
          _
        %s308 = sand.u32 %s25, 1
        %s309 = scalar_lea.sflag [#allocation8], %s308
        %s310 = sand.u32 %s134, 1
        %s311 = smul.addr %s310, 8
        %s312 = scalar_lea.vmem [#allocation9], %s311
        // Predicated region
        $region57: #{tpu_custom_call.1} parent=43 // pred_check
          %p313 = pneg %p147
        $region58: #{tpu_custom_call.1} parent=43 // pred_check_branch
          %315 = sbr.rel (%p313) target = $region60
        $region59: #{tpu_custom_call.1} parent=43 // pred_region
          %317 = dma.done %s309, 128
        $region60: #{tpu_custom_call.1} parent=43 // pred_fallthru
          _
        %318 = sfence
        %p319 = pneg %p53
        %p320 = pneg %p50
        %p321 = pneg %p74
        %p322 = pneg %p71
        %p323 = pneg %p95
        %p324 = pneg %p92
        %s325 = sand.u32 %s25, 1
        %s326 = scalar_lea.sflag [#allocation8], %s325
        %s327 = sand.u32 %s108, 1
        %s328 = smul.addr %s327, 8
        %s329 = scalar_lea.vmem [#allocation7], %s328
        %p330 = pneg %p121
        %p331 = pneg %p118
        %s332 = sand.u32 %s25, 1
        %s333 = scalar_lea.sflag [#allocation8], %s332
        %s334 = sand.u32 %s134, 1
        %s335 = smul.addr %s334, 8
        %s336 = scalar_lea.vmem [#allocation9], %s335
        %p337 = pneg %p147
        %p338 = pneg %p144
        %p339 = pneg %p168
        %p340 = pneg %p165
        %p341 = pneg %p194
        %p342 = pneg %p191
        %s343 = sand.u32 %s181, 1
        %s344 = scalar_lea.sflag [#allocation4], %s343
        %s345 = sand.u32 %s181, 1
        %s346 = smul.addr %s345, 24
        %s347 = scalar_lea.vmem [#allocation10], %s346
        %p349 = scmp.eq.s32.totalorder %s30, 0
        // Predicated region
        $region61: #{tpu_custom_call.1} parent=43 // pred_check
          %p350 = pneg %p349
        $region62: #{tpu_custom_call.1} parent=43 // pred_check_branch
          %352 = sbr.rel (%p350) target = $region64
        $region63: #{tpu_custom_call.1} parent=43 // pred_region
          %vm353 = vcmask 130048
          %354 = vst.msk [vmem:[%s347] sm:$0xff] %vm353, 0.0
          %355 = vst.msk [vmem:[%s347 + $0x8] sm:$0xff] %vm353, 0.0
          %356 = vst.msk [vmem:[%s347 + $0x10] sm:$0xff] %vm353, 0.0
        $region64: #{tpu_custom_call.1} parent=43 // pred_fallthru
          _
        %s357 = smul.u32 %s29, 8
        %s358 = scalar_lea.vmem %s1, %s357
        %v359 = vld [vmem:[%s358] sm:$0xff]
        %s360 = scalar_lea.vmem [#allocation6], %s357
        %v361 = vld [vmem:[%s360] sm:$0xff]
        %s362 = smul.u32 %s30, 9
        %s363 = sld [smem:[#allocation2 + %s362]]
        %v364 = vstv %s363
        %v365 = vmul.f32 %v364, %v359
        %v366 = vmul.f32 %v364, %v361
        %s367 = sadd.s32 %s362, 1
        %s368 = sld [smem:[#allocation2 + %s367]]
        %v369 = vstv %s368
        %v370 = vmul.f32 %v369, %v359
        %v371 = vmul.f32 %v369, %v361
        %373 = vrot.lane.b32.xlu0 %v370, 127
        %v374 = vpop.permute.xlu0 %373
        %v376 = vadd.f32 %v365, %v374
        %378 = vrot.lane.b32.xlu0 %v371, 127
        %v379 = vpop.permute.xlu0 %378
        %v381 = vadd.f32 %v366, %v379
        %s382 = sadd.s32 %s362, 2
        %s383 = sld [smem:[#allocation2 + %s382]]
        %v384 = vstv %s383
        %v385 = vmul.f32 %v384, %v359
        %v386 = vmul.f32 %v384, %v361
        %388 = vrot.lane.b32.xlu0 %v385, 126
        %v389 = vpop.permute.xlu0 %388
        %v391 = vadd.f32 %v376, %v389
        %393 = vrot.lane.b32.xlu0 %v386, 126
        %v394 = vpop.permute.xlu0 %393
        %v396 = vadd.f32 %v381, %v394
        %s397 = sadd.s32 %s357, 1
        %s398 = scalar_lea.vmem %s1, %s397
        %v399 = vld [vmem:[%s398] sm:$0xff]
        %s400 = scalar_lea.vmem [#allocation6], %s397
        %v401 = vld [vmem:[%s400] sm:$0xff]
        %s402 = sadd.s32 %s362, 3
        %s403 = sld [smem:[#allocation2 + %s402]]
        %v404 = vstv %s403
        %v405 = vmul.f32 %v404, %v399
        %v406 = vmul.f32 %v404, %v401
        %v407 = vadd.f32 %v391, %v405
        %v408 = vadd.f32 %v396, %v406
        %s409 = sadd.s32 %s362, 4
        %s410 = sld [smem:[#allocation2 + %s409]]
        %v411 = vstv %s410
        %v412 = vmul.f32 %v411, %v399
        %v413 = vmul.f32 %v411, %v401
        %415 = vrot.lane.b32.xlu0 %v412, 127
        %v416 = vpop.permute.xlu0 %415
        %v418 = vadd.f32 %v407, %v416
        %420 = vrot.lane.b32.xlu0 %v413, 127
        %v421 = vpop.permute.xlu0 %420
        %v423 = vadd.f32 %v408, %v421
        %s424 = sadd.s32 %s362, 5
        %s425 = sld [smem:[#allocation2 + %s424]]
        %v426 = vstv %s425
        %v427 = vmul.f32 %v426, %v399
        %v428 = vmul.f32 %v426, %v401
        %430 = vrot.lane.b32.xlu0 %v427, 126
        %v431 = vpop.permute.xlu0 %430
        %v433 = vadd.f32 %v418, %v431
        %435 = vrot.lane.b32.xlu0 %v428, 126
        %v436 = vpop.permute.xlu0 %435
        %v438 = vadd.f32 %v423, %v436
        %s439 = sadd.s32 %s357, 2
        %s440 = scalar_lea.vmem %s1, %s439
        %v441 = vld [vmem:[%s440] sm:$0xff]
        %s442 = scalar_lea.vmem [#allocation6], %s439
        %v443 = vld [vmem:[%s442] sm:$0xff]
        %s444 = sadd.s32 %s362, 6
        %s445 = sld [smem:[#allocation2 + %s444]]
        %v446 = vstv %s445
        %v447 = vmul.f32 %v446, %v441
        %v448 = vmul.f32 %v446, %v443
        %v449 = vadd.f32 %v433, %v447
        %v450 = vadd.f32 %v438, %v448
        %s451 = sadd.s32 %s362, 7
        %s452 = sld [smem:[#allocation2 + %s451]]
        %v453 = vstv %s452
        %v454 = vmul.f32 %v453, %v441
        %v455 = vmul.f32 %v453, %v443
        %457 = vrot.lane.b32.xlu0 %v454, 127
        %v458 = vpop.permute.xlu0 %457
        %v460 = vadd.f32 %v449, %v458
        %462 = vrot.lane.b32.xlu0 %v455, 127
        %v463 = vpop.permute.xlu0 %462
        %v465 = vadd.f32 %v450, %v463
        %s466 = sadd.s32 %s362, 8
        %s467 = sld [smem:[#allocation2 + %s466]]
        %v468 = vstv %s467
        %v469 = vmul.f32 %v468, %v441
        %v470 = vmul.f32 %v468, %v443
        %472 = vrot.lane.b32.xlu0 %v469, 126
        %v473 = vpop.permute.xlu0 %472
        %v475 = vadd.f32 %v460, %v473
        %477 = vrot.lane.b32.xlu0 %v470, 126
        %v478 = vpop.permute.xlu0 %477
        %v480 = vadd.f32 %v465, %v478
        %v481 = vld [vmem:[%s302] sm:$0xff]
        %v482 = vsub.f32 %v481, %v475
        %v483 = vmax.f32 %v482, 0.0
        %v484 = vmin.f32 %v483, 15.0
        %v485 = vsub.f32 %v484, 0.5
        %v486 = vld [vmem:[%s312] sm:$0xff]
        %v487 = vsub.f32 %v486, %v480
        %v488 = vmax.f32 %v487, 0.0
        %v489 = vmin.f32 %v488, 15.0
        %v490 = vsub.f32 %v489, 0.5
        %v491 = vlaneseq
        %v492 = vshrl.u32 %v491, 7
        %v493 = vadd.s32 %v492, 8
        %v494 = vcvt.s32.f32 %v492
        %v495 = vcvt.s32.f32 %v493
        %v496 = vld [vmem:[%s5] sm:$0xf]
        %v497 = vld [vmem:[%s5 + $0x4] sm:$0xf]
        %v498 = vld [vmem:[%s5 + $0x8] sm:$0xf]
        %v499 = vld [vmem:[%s5 + $0xc] sm:$0xf]
        %v500 = vld [vmem:[%s5 + $0x10] sm:$0xf]
        %v501 = vld [vmem:[%s5 + $0x14] sm:$0xf]
        %v502 = vperm.slane %v485, 0
        %v503 = vsub.f32 %v494, %v502
        %v504 = vsub.f32 %v495, %v502
        %v505 = vand.u32 2147483647, %v503
        %v506 = vand.u32 2147483647, %v504
        %v507 = vsub.f32 1.0, %v505
        %v508 = vsub.f32 1.0, %v506
        %v509 = vmax.f32 %v507, 0.0
        %v510 = vmax.f32 %v508, 0.0
        %v511 = vperm.slane %v490, 0
        %v512 = vsub.f32 %v494, %v511
        %v513 = vsub.f32 %v495, %v511
        %v514 = vand.u32 2147483647, %v512
        %v515 = vand.u32 2147483647, %v513
        %v516 = vsub.f32 1.0, %v514
        %v517 = vsub.f32 1.0, %v515
        %v518 = vmax.f32 %v516, 0.0
        %v519 = vmax.f32 %v517, 0.0
        %v520 = vpack.c.bf16 %v510, %v509
        %v527 = vunpack.c.l.b16 %v496
        %v528 = vunpack.c.l.b16 %v497
        %v529 = vunpack.c.l.b16 %v498
        %v530 = vunpack.c.l.b16 %v499
        %v531 = vunpack.c.l.b16 %v500
        %v532 = vunpack.c.l.b16 %v501
        %v533 = vpack.c.b16 %v528, %v527
        %v534 = vpack.c.b16 %v530, %v529
        %v535 = vpack.c.b16 %v532, %v531
        %vm536 = vcmask 130048
        %v538 = vsel %vm536, %v533, 0
        %v541 = vsel %vm536, %v534, 0
        %v544 = vsel %vm536, %v535, 0
        %546 = vmatpush.bf16.msra.mxu0 0
        %547 = vmatpush.bf16.msra.mxu0 0
        %548 = vmatpush.bf16.msra.mxu0 0
        %549 = vmatpush.bf16.msra.mxu0 0
        %550 = vmatpush.bf16.msra.mxu0 0
        %551 = vmatpush.bf16.msra.mxu0 0
        %552 = vmatpush.bf16.msra.mxu0 0
        %553 = vmatpush.bf16.msra.mxu0 %v520
        %554 = vmatmul.bf16.gmra.mxu0 %v538
        %v555 = vpop.f32.mrf.mxu0
        %v556 = vadd.f32 0.0, %v555
        %v557 = vpop.f32.mrf.mxu0
        %v558 = vadd.f32 0.0, %v557
        %559 = vmatmul.bf16.gmra.mxu0 %v541
        %v560 = vpop.f32.mrf.mxu0
        %v561 = vadd.f32 0.0, %v560
        %v562 = vpop.f32.mrf.mxu0
        %v563 = vadd.f32 0.0, %v562
        %564 = vmatmul.bf16.gmra.mxu0 %v544
        %v565 = vpop.f32.mrf.mxu0
        %v566 = vadd.f32 0.0, %v565
        %v567 = vpop.f32.mrf.mxu0
        %v568 = vadd.f32 0.0, %v567
        %569 = vdwg.mxu0
        %v570 = vmul.f32 %v556, %v518
        %v571 = vmul.f32 %v558, %v519
        %v572 = vsel %vm536, %v570, 0.0
        %v573 = vsel %vm536, %v571, 0.0
        %v574 = vadd.f32 %v572, %v573
        %v575 = vrot.slane %v574, 4
        %v576 = vadd.f32 %v574, %v575
        %v577 = vrot.slane %v576, 2
        %v578 = vadd.f32 %v576, %v577
        %v579 = vrot.slane %v578, 1
        %v580 = vadd.f32 %v578, %v579
        %v581 = vmul.f32 %v561, %v518
        %v582 = vmul.f32 %v563, %v519
        %v583 = vsel %vm536, %v581, 0.0
        %v584 = vsel %vm536, %v582, 0.0
        %v585 = vadd.f32 %v583, %v584
        %v586 = vrot.slane %v585, 4
        %v587 = vadd.f32 %v585, %v586
        %v588 = vrot.slane %v587, 2
        %v589 = vadd.f32 %v587, %v588
        %v590 = vrot.slane %v589, 1
        %v591 = vadd.f32 %v589, %v590
        %v592 = vmul.f32 %v566, %v518
        %v593 = vmul.f32 %v568, %v519
        %v594 = vsel %vm536, %v592, 0.0
        %v595 = vsel %vm536, %v593, 0.0
        %v596 = vadd.f32 %v594, %v595
        %v597 = vrot.slane %v596, 4
        %v598 = vadd.f32 %v596, %v597
        %v599 = vrot.slane %v598, 2
        %v600 = vadd.f32 %v598, %v599
        %v601 = vrot.slane %v600, 1
        %v602 = vadd.f32 %v600, %v601
        %v603 = vperm.slane %v485, 1
        %v604 = vsub.f32 %v494, %v603
        %v605 = vsub.f32 %v495, %v603
        %v606 = vand.u32 2147483647, %v604
        %v607 = vand.u32 2147483647, %v605
        %v608 = vsub.f32 1.0, %v606
        %v609 = vsub.f32 1.0, %v607
        %v610 = vmax.f32 %v608, 0.0
        %v611 = vmax.f32 %v609, 0.0
        %v612 = vperm.slane %v490, 1
        %v613 = vsub.f32 %v494, %v612
        %v614 = vsub.f32 %v495, %v612
        %v615 = vand.u32 2147483647, %v613
        %v616 = vand.u32 2147483647, %v614
        %v617 = vsub.f32 1.0, %v615
        %v618 = vsub.f32 1.0, %v616
        %v619 = vmax.f32 %v617, 0.0
        %v620 = vmax.f32 %v618, 0.0
        %v621 = vpack.c.bf16 %v611, %v610
        %622 = vmatpush.bf16.msra.mxu0 0
        %623 = vmatpush.bf16.msra.mxu0 0
        %624 = vmatpush.bf16.msra.mxu0 0
        %625 = vmatpush.bf16.msra.mxu0 0
        %626 = vmatpush.bf16.msra.mxu0 0
        %627 = vmatpush.bf16.msra.mxu0 0
        %628 = vmatpush.bf16.msra.mxu0 0
        %629 = vmatpush.bf16.msra.mxu0 %v621
        %630 = vmatmul.bf16.gmra.mxu0 %v538
        %v631 = vpop.f32.mrf.mxu0
        %v632 = vadd.f32 0.0, %v631
        %v633 = vpop.f32.mrf.mxu0
        %v634 = vadd.f32 0.0, %v633
        %635 = vmatmul.bf16.gmra.mxu0 %v541
        %v636 = vpop.f32.mrf.mxu0
        %v637 = vadd.f32 0.0, %v636
        %v638 = vpop.f32.mrf.mxu0
        %v639 = vadd.f32 0.0, %v638
        %640 = vmatmul.bf16.gmra.mxu0 %v544
        %v641 = vpop.f32.mrf.mxu0
        %v642 = vadd.f32 0.0, %v641
        %v643 = vpop.f32.mrf.mxu0
        %v644 = vadd.f32 0.0, %v643
        %645 = vdwg.mxu0
        %v646 = vmul.f32 %v632, %v619
        %v647 = vmul.f32 %v634, %v620
        %v648 = vsel %vm536, %v646, 0.0
        %v649 = vsel %vm536, %v647, 0.0
        %v650 = vadd.f32 %v648, %v649
        %v651 = vrot.slane %v650, 4
        %v652 = vadd.f32 %v650, %v651
        %v653 = vrot.slane %v652, 2
        %v654 = vadd.f32 %v652, %v653
        %v655 = vrot.slane %v654, 1
        %v656 = vadd.f32 %v654, %v655
        %v657 = vmul.f32 %v637, %v619
        %v658 = vmul.f32 %v639, %v620
        %v659 = vsel %vm536, %v657, 0.0
        %v660 = vsel %vm536, %v658, 0.0
        %v661 = vadd.f32 %v659, %v660
        %v662 = vrot.slane %v661, 4
        %v663 = vadd.f32 %v661, %v662
        %v664 = vrot.slane %v663, 2
        %v665 = vadd.f32 %v663, %v664
        %v666 = vrot.slane %v665, 1
        %v667 = vadd.f32 %v665, %v666
        %v668 = vmul.f32 %v642, %v619
        %v669 = vmul.f32 %v644, %v620
        %v670 = vsel %vm536, %v668, 0.0
        %v671 = vsel %vm536, %v669, 0.0
        %v672 = vadd.f32 %v670, %v671
        %v673 = vrot.slane %v672, 4
        %v674 = vadd.f32 %v672, %v673
        %v675 = vrot.slane %v674, 2
        %v676 = vadd.f32 %v674, %v675
        %v677 = vrot.slane %v676, 1
        %v678 = vadd.f32 %v676, %v677
        %v679 = vperm.slane %v485, 2
        %v680 = vsub.f32 %v494, %v679
        %v681 = vsub.f32 %v495, %v679
        %v682 = vand.u32 2147483647, %v680
        %v683 = vand.u32 2147483647, %v681
        %v684 = vsub.f32 1.0, %v682
        %v685 = vsub.f32 1.0, %v683
        %v686 = vmax.f32 %v684, 0.0
        %v687 = vmax.f32 %v685, 0.0
        %v688 = vperm.slane %v490, 2
        %v689 = vsub.f32 %v494, %v688
        %v690 = vsub.f32 %v495, %v688
        %v691 = vand.u32 2147483647, %v689
        %v692 = vand.u32 2147483647, %v690
        %v693 = vsub.f32 1.0, %v691
        %v694 = vsub.f32 1.0, %v692
        %v695 = vmax.f32 %v693, 0.0
        %v696 = vmax.f32 %v694, 0.0
        %v697 = vpack.c.bf16 %v687, %v686
        %698 = vmatpush.bf16.msra.mxu0 0
        %699 = vmatpush.bf16.msra.mxu0 0
        %700 = vmatpush.bf16.msra.mxu0 0
        %701 = vmatpush.bf16.msra.mxu0 0
        %702 = vmatpush.bf16.msra.mxu0 0
        %703 = vmatpush.bf16.msra.mxu0 0
        %704 = vmatpush.bf16.msra.mxu0 0
        %705 = vmatpush.bf16.msra.mxu0 %v697
        %706 = vmatmul.bf16.gmra.mxu0 %v538
        %v707 = vpop.f32.mrf.mxu0
        %v708 = vadd.f32 0.0, %v707
        %v709 = vpop.f32.mrf.mxu0
        %v710 = vadd.f32 0.0, %v709
        %711 = vmatmul.bf16.gmra.mxu0 %v541
        %v712 = vpop.f32.mrf.mxu0
        %v713 = vadd.f32 0.0, %v712
        %v714 = vpop.f32.mrf.mxu0
        %v715 = vadd.f32 0.0, %v714
        %716 = vmatmul.bf16.gmra.mxu0 %v544
        %v717 = vpop.f32.mrf.mxu0
        %v718 = vadd.f32 0.0, %v717
        %v719 = vpop.f32.mrf.mxu0
        %v720 = vadd.f32 0.0, %v719
        %721 = vdwg.mxu0
        %v722 = vmul.f32 %v708, %v695
        %v723 = vmul.f32 %v710, %v696
        %v724 = vsel %vm536, %v722, 0.0
        %v725 = vsel %vm536, %v723, 0.0
        %v726 = vadd.f32 %v724, %v725
        %v727 = vrot.slane %v726, 4
        %v728 = vadd.f32 %v726, %v727
        %v729 = vrot.slane %v728, 2
        %v730 = vadd.f32 %v728, %v729
        %v731 = vrot.slane %v730, 1
        %v732 = vadd.f32 %v730, %v731
        %v733 = vmul.f32 %v713, %v695
        %v734 = vmul.f32 %v715, %v696
        %v735 = vsel %vm536, %v733, 0.0
        %v736 = vsel %vm536, %v734, 0.0
        %v737 = vadd.f32 %v735, %v736
        %v738 = vrot.slane %v737, 4
        %v739 = vadd.f32 %v737, %v738
        %v740 = vrot.slane %v739, 2
        %v741 = vadd.f32 %v739, %v740
        %v742 = vrot.slane %v741, 1
        %v743 = vadd.f32 %v741, %v742
        %v744 = vmul.f32 %v718, %v695
        %v745 = vmul.f32 %v720, %v696
        %v746 = vsel %vm536, %v744, 0.0
        %v747 = vsel %vm536, %v745, 0.0
        %v748 = vadd.f32 %v746, %v747
        %v749 = vrot.slane %v748, 4
        %v750 = vadd.f32 %v748, %v749
        %v751 = vrot.slane %v750, 2
        %v752 = vadd.f32 %v750, %v751
        %v753 = vrot.slane %v752, 1
        %v754 = vadd.f32 %v752, %v753
        %v755 = vperm.slane %v485, 3
        %v756 = vsub.f32 %v494, %v755
        %v757 = vsub.f32 %v495, %v755
        %v758 = vand.u32 2147483647, %v756
        %v759 = vand.u32 2147483647, %v757
        %v760 = vsub.f32 1.0, %v758
        %v761 = vsub.f32 1.0, %v759
        %v762 = vmax.f32 %v760, 0.0
        %v763 = vmax.f32 %v761, 0.0
        %v764 = vperm.slane %v490, 3
        %v765 = vsub.f32 %v494, %v764
        %v766 = vsub.f32 %v495, %v764
        %v767 = vand.u32 2147483647, %v765
        %v768 = vand.u32 2147483647, %v766
        %v769 = vsub.f32 1.0, %v767
        %v770 = vsub.f32 1.0, %v768
        %v771 = vmax.f32 %v769, 0.0
        %v772 = vmax.f32 %v770, 0.0
        %v773 = vpack.c.bf16 %v763, %v762
        %774 = vmatpush.bf16.msra.mxu0 0
        %775 = vmatpush.bf16.msra.mxu0 0
        %776 = vmatpush.bf16.msra.mxu0 0
        %777 = vmatpush.bf16.msra.mxu0 0
        %778 = vmatpush.bf16.msra.mxu0 0
        %779 = vmatpush.bf16.msra.mxu0 0
        %780 = vmatpush.bf16.msra.mxu0 0
        %781 = vmatpush.bf16.msra.mxu0 %v773
        %782 = vmatmul.bf16.gmra.mxu0 %v538
        %v783 = vpop.f32.mrf.mxu0
        %v784 = vadd.f32 0.0, %v783
        %v785 = vpop.f32.mrf.mxu0
        %v786 = vadd.f32 0.0, %v785
        %787 = vmatmul.bf16.gmra.mxu0 %v541
        %v788 = vpop.f32.mrf.mxu0
        %v789 = vadd.f32 0.0, %v788
        %v790 = vpop.f32.mrf.mxu0
        %v791 = vadd.f32 0.0, %v790
        %792 = vmatmul.bf16.gmra.mxu0 %v544
        %v793 = vpop.f32.mrf.mxu0
        %v794 = vadd.f32 0.0, %v793
        %v795 = vpop.f32.mrf.mxu0
        %v796 = vadd.f32 0.0, %v795
        %797 = vdwg.mxu0
        %v798 = vmul.f32 %v784, %v771
        %v799 = vmul.f32 %v786, %v772
        %v800 = vsel %vm536, %v798, 0.0
        %v801 = vsel %vm536, %v799, 0.0
        %v802 = vadd.f32 %v800, %v801
        %v803 = vrot.slane %v802, 4
        %v804 = vadd.f32 %v802, %v803
        %v805 = vrot.slane %v804, 2
        %v806 = vadd.f32 %v804, %v805
        %v807 = vrot.slane %v806, 1
        %v808 = vadd.f32 %v806, %v807
        %v809 = vmul.f32 %v789, %v771
        %v810 = vmul.f32 %v791, %v772
        %v811 = vsel %vm536, %v809, 0.0
        %v812 = vsel %vm536, %v810, 0.0
        %v813 = vadd.f32 %v811, %v812
        %v814 = vrot.slane %v813, 4
        %v815 = vadd.f32 %v813, %v814
        %v816 = vrot.slane %v815, 2
        %v817 = vadd.f32 %v815, %v816
        %v818 = vrot.slane %v817, 1
        %v819 = vadd.f32 %v817, %v818
        %v820 = vmul.f32 %v794, %v771
        %v821 = vmul.f32 %v796, %v772
        %v822 = vsel %vm536, %v820, 0.0
        %v823 = vsel %vm536, %v821, 0.0
        %v824 = vadd.f32 %v822, %v823
        %v825 = vrot.slane %v824, 4
        %v826 = vadd.f32 %v824, %v825
        %v827 = vrot.slane %v826, 2
        %v828 = vadd.f32 %v826, %v827
        %v829 = vrot.slane %v828, 1
        %v830 = vadd.f32 %v828, %v829
        %v831 = vperm.slane %v485, 4
        %v832 = vsub.f32 %v494, %v831
        %v833 = vsub.f32 %v495, %v831
        %v834 = vand.u32 2147483647, %v832
        %v835 = vand.u32 2147483647, %v833
        %v836 = vsub.f32 1.0, %v834
        %v837 = vsub.f32 1.0, %v835
        %v838 = vmax.f32 %v836, 0.0
        %v839 = vmax.f32 %v837, 0.0
        %v840 = vperm.slane %v490, 4
        %v841 = vsub.f32 %v494, %v840
        %v842 = vsub.f32 %v495, %v840
        %v843 = vand.u32 2147483647, %v841
        %v844 = vand.u32 2147483647, %v842
        %v845 = vsub.f32 1.0, %v843
        %v846 = vsub.f32 1.0, %v844
        %v847 = vmax.f32 %v845, 0.0
        %v848 = vmax.f32 %v846, 0.0
        %v849 = vpack.c.bf16 %v839, %v838
        %850 = vmatpush.bf16.msra.mxu0 0
        %851 = vmatpush.bf16.msra.mxu0 0
        %852 = vmatpush.bf16.msra.mxu0 0
        %853 = vmatpush.bf16.msra.mxu0 0
        %854 = vmatpush.bf16.msra.mxu0 0
        %855 = vmatpush.bf16.msra.mxu0 0
        %856 = vmatpush.bf16.msra.mxu0 0
        %857 = vmatpush.bf16.msra.mxu0 %v849
        %858 = vmatmul.bf16.gmra.mxu0 %v538
        %v859 = vpop.f32.mrf.mxu0
        %v860 = vadd.f32 0.0, %v859
        %v861 = vpop.f32.mrf.mxu0
        %v862 = vadd.f32 0.0, %v861
        %863 = vmatmul.bf16.gmra.mxu0 %v541
        %v864 = vpop.f32.mrf.mxu0
        %v865 = vadd.f32 0.0, %v864
        %v866 = vpop.f32.mrf.mxu0
        %v867 = vadd.f32 0.0, %v866
        %868 = vmatmul.bf16.gmra.mxu0 %v544
        %v869 = vpop.f32.mrf.mxu0
        %v870 = vadd.f32 0.0, %v869
        %v871 = vpop.f32.mrf.mxu0
        %v872 = vadd.f32 0.0, %v871
        %873 = vdwg.mxu0
        %v874 = vmul.f32 %v860, %v847
        %v875 = vmul.f32 %v862, %v848
        %v876 = vsel %vm536, %v874, 0.0
        %v877 = vsel %vm536, %v875, 0.0
        %v878 = vadd.f32 %v876, %v877
        %v879 = vrot.slane %v878, 4
        %v880 = vadd.f32 %v878, %v879
        %v881 = vrot.slane %v880, 2
        %v882 = vadd.f32 %v880, %v881
        %v883 = vrot.slane %v882, 1
        %v884 = vadd.f32 %v882, %v883
        %v885 = vmul.f32 %v865, %v847
        %v886 = vmul.f32 %v867, %v848
        %v887 = vsel %vm536, %v885, 0.0
        %v888 = vsel %vm536, %v886, 0.0
        %v889 = vadd.f32 %v887, %v888
        %v890 = vrot.slane %v889, 4
        %v891 = vadd.f32 %v889, %v890
        %v892 = vrot.slane %v891, 2
        %v893 = vadd.f32 %v891, %v892
        %v894 = vrot.slane %v893, 1
        %v895 = vadd.f32 %v893, %v894
        %v896 = vmul.f32 %v870, %v847
        %v897 = vmul.f32 %v872, %v848
        %v898 = vsel %vm536, %v896, 0.0
        %v899 = vsel %vm536, %v897, 0.0
        %v900 = vadd.f32 %v898, %v899
        %v901 = vrot.slane %v900, 4
        %v902 = vadd.f32 %v900, %v901
        %v903 = vrot.slane %v902, 2
        %v904 = vadd.f32 %v902, %v903
        %v905 = vrot.slane %v904, 1
        %v906 = vadd.f32 %v904, %v905
        %v907 = vperm.slane %v485, 5
        %v908 = vsub.f32 %v494, %v907
        %v909 = vsub.f32 %v495, %v907
        %v910 = vand.u32 2147483647, %v908
        %v911 = vand.u32 2147483647, %v909
        %v912 = vsub.f32 1.0, %v910
        %v913 = vsub.f32 1.0, %v911
        %v914 = vmax.f32 %v912, 0.0
        %v915 = vmax.f32 %v913, 0.0
        %v916 = vperm.slane %v490, 5
        %v917 = vsub.f32 %v494, %v916
        %v918 = vsub.f32 %v495, %v916
        %v919 = vand.u32 2147483647, %v917
        %v920 = vand.u32 2147483647, %v918
        %v921 = vsub.f32 1.0, %v919
        %v922 = vsub.f32 1.0, %v920
        %v923 = vmax.f32 %v921, 0.0
        %v924 = vmax.f32 %v922, 0.0
        %v925 = vpack.c.bf16 %v915, %v914
        %926 = vmatpush.bf16.msra.mxu0 0
        %927 = vmatpush.bf16.msra.mxu0 0
        %928 = vmatpush.bf16.msra.mxu0 0
        %929 = vmatpush.bf16.msra.mxu0 0
        %930 = vmatpush.bf16.msra.mxu0 0
        %931 = vmatpush.bf16.msra.mxu0 0
        %932 = vmatpush.bf16.msra.mxu0 0
        %933 = vmatpush.bf16.msra.mxu0 %v925
        %934 = vmatmul.bf16.gmra.mxu0 %v538
        %v935 = vpop.f32.mrf.mxu0
        %v936 = vadd.f32 0.0, %v935
        %v937 = vpop.f32.mrf.mxu0
        %v938 = vadd.f32 0.0, %v937
        %939 = vmatmul.bf16.gmra.mxu0 %v541
        %v940 = vpop.f32.mrf.mxu0
        %v941 = vadd.f32 0.0, %v940
        %v942 = vpop.f32.mrf.mxu0
        %v943 = vadd.f32 0.0, %v942
        %944 = vmatmul.bf16.gmra.mxu0 %v544
        %v945 = vpop.f32.mrf.mxu0
        %v946 = vadd.f32 0.0, %v945
        %v947 = vpop.f32.mrf.mxu0
        %v948 = vadd.f32 0.0, %v947
        %949 = vdwg.mxu0
        %v950 = vmul.f32 %v936, %v923
        %v951 = vmul.f32 %v938, %v924
        %v952 = vsel %vm536, %v950, 0.0
        %v953 = vsel %vm536, %v951, 0.0
        %v954 = vadd.f32 %v952, %v953
        %v955 = vrot.slane %v954, 4
        %v956 = vadd.f32 %v954, %v955
        %v957 = vrot.slane %v956, 2
        %v958 = vadd.f32 %v956, %v957
        %v959 = vrot.slane %v958, 1
        %v960 = vadd.f32 %v958, %v959
        %v961 = vmul.f32 %v941, %v923
        %v962 = vmul.f32 %v943, %v924
        %v963 = vsel %vm536, %v961, 0.0
        %v964 = vsel %vm536, %v962, 0.0
        %v965 = vadd.f32 %v963, %v964
        %v966 = vrot.slane %v965, 4
        %v967 = vadd.f32 %v965, %v966
        %v968 = vrot.slane %v967, 2
        %v969 = vadd.f32 %v967, %v968
        %v970 = vrot.slane %v969, 1
        %v971 = vadd.f32 %v969, %v970
        %v972 = vmul.f32 %v946, %v923
        %v973 = vmul.f32 %v948, %v924
        %v974 = vsel %vm536, %v972, 0.0
        %v975 = vsel %vm536, %v973, 0.0
        %v976 = vadd.f32 %v974, %v975
        %v977 = vrot.slane %v976, 4
        %v978 = vadd.f32 %v976, %v977
        %v979 = vrot.slane %v978, 2
        %v980 = vadd.f32 %v978, %v979
        %v981 = vrot.slane %v980, 1
        %v982 = vadd.f32 %v980, %v981
        %v983 = vperm.slane %v485, 6
        %v984 = vsub.f32 %v494, %v983
        %v985 = vsub.f32 %v495, %v983
        %v986 = vand.u32 2147483647, %v984
        %v987 = vand.u32 2147483647, %v985
        %v988 = vsub.f32 1.0, %v986
        %v989 = vsub.f32 1.0, %v987
        %v990 = vmax.f32 %v988, 0.0
        %v991 = vmax.f32 %v989, 0.0
        %v992 = vperm.slane %v490, 6
        %v993 = vsub.f32 %v494, %v992
        %v994 = vsub.f32 %v495, %v992
        %v995 = vand.u32 2147483647, %v993
        %v996 = vand.u32 2147483647, %v994
        %v997 = vsub.f32 1.0, %v995
        %v998 = vsub.f32 1.0, %v996
        %v999 = vmax.f32 %v997, 0.0
        %v1000 = vmax.f32 %v998, 0.0
        %v1001 = vpack.c.bf16 %v991, %v990
        %1002 = vmatpush.bf16.msra.mxu0 0
        %1003 = vmatpush.bf16.msra.mxu0 0
        %1004 = vmatpush.bf16.msra.mxu0 0
        %1005 = vmatpush.bf16.msra.mxu0 0
        %1006 = vmatpush.bf16.msra.mxu0 0
        %1007 = vmatpush.bf16.msra.mxu0 0
        %1008 = vmatpush.bf16.msra.mxu0 0
        %1009 = vmatpush.bf16.msra.mxu0 %v1001
        %1010 = vmatmul.bf16.gmra.mxu0 %v538
        %v1011 = vpop.f32.mrf.mxu0
        %v1012 = vadd.f32 0.0, %v1011
        %v1013 = vpop.f32.mrf.mxu0
        %v1014 = vadd.f32 0.0, %v1013
        %1015 = vmatmul.bf16.gmra.mxu0 %v541
        %v1016 = vpop.f32.mrf.mxu0
        %v1017 = vadd.f32 0.0, %v1016
        %v1018 = vpop.f32.mrf.mxu0
        %v1019 = vadd.f32 0.0, %v1018
        %1020 = vmatmul.bf16.gmra.mxu0 %v544
        %v1021 = vpop.f32.mrf.mxu0
        %v1022 = vadd.f32 0.0, %v1021
        %v1023 = vpop.f32.mrf.mxu0
        %v1024 = vadd.f32 0.0, %v1023
        %1025 = vdwg.mxu0
        %v1026 = vmul.f32 %v1012, %v999
        %v1027 = vmul.f32 %v1014, %v1000
        %v1028 = vsel %vm536, %v1026, 0.0
        %v1029 = vsel %vm536, %v1027, 0.0
        %v1030 = vadd.f32 %v1028, %v1029
        %v1031 = vrot.slane %v1030, 4
        %v1032 = vadd.f32 %v1030, %v1031
        %v1033 = vrot.slane %v1032, 2
        %v1034 = vadd.f32 %v1032, %v1033
        %v1035 = vrot.slane %v1034, 1
        %v1036 = vadd.f32 %v1034, %v1035
        %v1037 = vmul.f32 %v1017, %v999
        %v1038 = vmul.f32 %v1019, %v1000
        %v1039 = vsel %vm536, %v1037, 0.0
        %v1040 = vsel %vm536, %v1038, 0.0
        %v1041 = vadd.f32 %v1039, %v1040
        %v1042 = vrot.slane %v1041, 4
        %v1043 = vadd.f32 %v1041, %v1042
        %v1044 = vrot.slane %v1043, 2
        %v1045 = vadd.f32 %v1043, %v1044
        %v1046 = vrot.slane %v1045, 1
        %v1047 = vadd.f32 %v1045, %v1046
        %v1048 = vmul.f32 %v1022, %v999
        %v1049 = vmul.f32 %v1024, %v1000
        %v1050 = vsel %vm536, %v1048, 0.0
        %v1051 = vsel %vm536, %v1049, 0.0
        %v1052 = vadd.f32 %v1050, %v1051
        %v1053 = vrot.slane %v1052, 4
        %v1054 = vadd.f32 %v1052, %v1053
        %v1055 = vrot.slane %v1054, 2
        %v1056 = vadd.f32 %v1054, %v1055
        %v1057 = vrot.slane %v1056, 1
        %v1058 = vadd.f32 %v1056, %v1057
        %v1059 = vperm.slane %v485, 7
        %v1060 = vsub.f32 %v494, %v1059
        %v1061 = vsub.f32 %v495, %v1059
        %v1062 = vand.u32 2147483647, %v1060
        %v1063 = vand.u32 2147483647, %v1061
        %v1064 = vsub.f32 1.0, %v1062
        %v1065 = vsub.f32 1.0, %v1063
        %v1066 = vmax.f32 %v1064, 0.0
        %v1067 = vmax.f32 %v1065, 0.0
        %v1068 = vperm.slane %v490, 7
        %v1069 = vsub.f32 %v494, %v1068
        %v1070 = vsub.f32 %v495, %v1068
        %v1071 = vand.u32 2147483647, %v1069
        %v1072 = vand.u32 2147483647, %v1070
        %v1073 = vsub.f32 1.0, %v1071
        %v1074 = vsub.f32 1.0, %v1072
        %v1075 = vmax.f32 %v1073, 0.0
        %v1076 = vmax.f32 %v1074, 0.0
        %v1077 = vpack.c.bf16 %v1067, %v1066
        %1078 = vmatpush.bf16.msra.mxu0 0
        %1079 = vmatpush.bf16.msra.mxu0 0
        %1080 = vmatpush.bf16.msra.mxu0 0
        %1081 = vmatpush.bf16.msra.mxu0 0
        %1082 = vmatpush.bf16.msra.mxu0 0
        %1083 = vmatpush.bf16.msra.mxu0 0
        %1084 = vmatpush.bf16.msra.mxu0 0
        %1085 = vmatpush.bf16.msra.mxu0 %v1077
        %1086 = vmatmul.bf16.gmra.mxu0 %v538
        %v1087 = vpop.f32.mrf.mxu0
        %v1088 = vadd.f32 0.0, %v1087
        %v1089 = vpop.f32.mrf.mxu0
        %v1090 = vadd.f32 0.0, %v1089
        %1091 = vmatmul.bf16.gmra.mxu0 %v541
        %v1092 = vpop.f32.mrf.mxu0
        %v1093 = vadd.f32 0.0, %v1092
        %v1094 = vpop.f32.mrf.mxu0
        %v1095 = vadd.f32 0.0, %v1094
        %1096 = vmatmul.bf16.gmra.mxu0 %v544
        %v1097 = vpop.f32.mrf.mxu0
        %v1098 = vadd.f32 0.0, %v1097
        %v1099 = vpop.f32.mrf.mxu0
        %v1100 = vadd.f32 0.0, %v1099
        %1101 = vdwg.mxu0
        %v1102 = vmul.f32 %v1088, %v1075
        %v1103 = vmul.f32 %v1090, %v1076
        %v1104 = vsel %vm536, %v1102, 0.0
        %v1105 = vsel %vm536, %v1103, 0.0
        %v1106 = vadd.f32 %v1104, %v1105
        %v1107 = vrot.slane %v1106, 4
        %v1108 = vadd.f32 %v1106, %v1107
        %v1109 = vrot.slane %v1108, 2
        %v1110 = vadd.f32 %v1108, %v1109
        %v1111 = vrot.slane %v1110, 1
        %v1112 = vadd.f32 %v1110, %v1111
        %v1113 = vmul.f32 %v1093, %v1075
        %v1114 = vmul.f32 %v1095, %v1076
        %v1115 = vsel %vm536, %v1113, 0.0
        %v1116 = vsel %vm536, %v1114, 0.0
        %v1117 = vadd.f32 %v1115, %v1116
        %v1118 = vrot.slane %v1117, 4
        %v1119 = vadd.f32 %v1117, %v1118
        %v1120 = vrot.slane %v1119, 2
        %v1121 = vadd.f32 %v1119, %v1120
        %v1122 = vrot.slane %v1121, 1
        %v1123 = vadd.f32 %v1121, %v1122
        %v1124 = vmul.f32 %v1098, %v1075
        %v1125 = vmul.f32 %v1100, %v1076
        %v1126 = vsel %vm536, %v1124, 0.0
        %v1127 = vsel %vm536, %v1125, 0.0
        %v1128 = vadd.f32 %v1126, %v1127
        %v1129 = vrot.slane %v1128, 4
        %v1130 = vadd.f32 %v1128, %v1129
        %v1131 = vrot.slane %v1130, 2
        %v1132 = vadd.f32 %v1130, %v1131
        %v1133 = vrot.slane %v1132, 1
        %v1134 = vadd.f32 %v1132, %v1133
        %v1135 = vld [vmem:[%s347] sm:$0xff]
        %vm1136 = vcmask 1040384
        %v1137 = vsel %vm1136, %v580, %v656
        %vm1138 = vcmask 1041408
        %v1139 = vsel %vm1138, %v1137, %v732
        %vm1140 = vcmask 1042432
        %v1141 = vsel %vm1140, %v1139, %v808
        %vm1142 = vcmask 1043456
        %v1143 = vsel %vm1142, %v1141, %v884
        %vm1144 = vcmask 1044480
        %v1145 = vsel %vm1144, %v1143, %v960
        %vm1146 = vcmask 1045504
        %v1147 = vsel %vm1146, %v1145, %v1036
        %vm1148 = vcmask 1046528
        %v1149 = vsel %vm1148, %v1147, %v1112
        %v1150 = vadd.f32 %v1135, %v1149
        %1151 = vst.msk [vmem:[%s347] sm:$0xff] %vm536, %v1150
        %s1152 = scalar_lea.vmem %s347, 8 [#allocation10]
        %v1153 = vld [vmem:[%s1152] sm:$0xff]
        %v1154 = vsel %vm1136, %v591, %v667
        %v1155 = vsel %vm1138, %v1154, %v743
        %v1156 = vsel %vm1140, %v1155, %v819
        %v1157 = vsel %vm1142, %v1156, %v895
        %v1158 = vsel %vm1144, %v1157, %v971
        %v1159 = vsel %vm1146, %v1158, %v1047
        %v1160 = vsel %vm1148, %v1159, %v1123
        %v1161 = vadd.f32 %v1153, %v1160
        %1162 = vst.msk [vmem:[%s1152] sm:$0xff] %vm536, %v1161
        %s1163 = scalar_lea.vmem %s347, 16 [#allocation10]
        %v1164 = vld [vmem:[%s1163] sm:$0xff]
        %v1165 = vsel %vm1136, %v602, %v678
        %v1166 = vsel %vm1138, %v1165, %v754
        %v1167 = vsel %vm1140, %v1166, %v830
        %v1168 = vsel %vm1142, %v1167, %v906
        %v1169 = vsel %vm1144, %v1168, %v982
        %v1170 = vsel %vm1146, %v1169, %v1058
        %v1171 = vsel %vm1148, %v1170, %v1134
        %v1172 = vadd.f32 %v1164, %v1171
        %1173 = vst.msk [vmem:[%s1163] sm:$0xff] %vm536, %v1172
        %p1174 = scmp.eq.s32.totalorder %s30, 8
        // Predicated region
        $region65: #{tpu_custom_call.1} parent=43 // pred_check
          %p1175 = pneg %p1174
        $region66: #{tpu_custom_call.1} parent=43 // pred_check_branch
          %1177 = sbr.rel (%p1175) target = $region68
        $region67: #{tpu_custom_call.1} parent=43 // pred_region
          %v1178 = vld [vmem:[%s347] sm:$0xff]
          %v1179 = vld [vmem:[%s347 + $0x8] sm:$0xff]
          %v1180 = vld [vmem:[%s347 + $0x10] sm:$0xff]
          %v1181 = vmul.f32 %v1178, 0.11111111
          %v1182 = vmul.f32 %v1179, 0.11111111
          %v1183 = vmul.f32 %v1180, 0.11111111
          %1184 = vst.msk [vmem:[%s347] sm:$0xff] %vm536, %v1181
          %1185 = vst.msk [vmem:[%s347 + $0x8] sm:$0xff] %vm536, %v1182
          %1186 = vst.msk [vmem:[%s347 + $0x10] sm:$0xff] %vm536, %v1183
        $region68: #{tpu_custom_call.1} parent=43 // pred_fallthru
          _
        %s1187 = sand.u32 %s181, 1
        %s1188 = scalar_lea.sflag [#allocation4], %s1187
        %s1189 = sand.u32 %s181, 1
        %s1190 = smul.addr %s1189, 24
        %s1191 = scalar_lea.vmem [#allocation10], %s1190
        // Predicated region
        $region69: #{tpu_custom_call.1} parent=43 // pred_check
          %p1192 = pneg %p191
        $region70: #{tpu_custom_call.1} parent=43 // pred_check_branch
          %1194 = sbr.rel (%p1192) target = $region72
        $region71: #{tpu_custom_call.1} parent=43 // pred_region
          %1196 = vsyncadd %s1188, 0
          %s1197 = smul.addr %s29, 8
          %s1198 = scalar_lea.hbm %s6, %s1197
          %s1199 = sshll.u32 %s1191, 4
          %s1200 = int_to_ptr.vmem [resolvable:$true] %s1199
          %s1201 = sshll.u32 %s1198, 4
          %s1202 = int_to_ptr.hbm [resolvable:$true] %s1201
          %1207 = dma.vmem_to_hbm [thread:$0]  %s1200, 384, %s1202, %s1188, 128, 256, 8
        $region72: #{tpu_custom_call.1} parent=43 // pred_fallthru
          _
      $region44: #{tpu_custom_call.1} parent=5 // pred_fallthru
        _
      %p1208 = scmp.le.s32.totalorder 2, %s20
      // Predicated region
      $region73: #{tpu_custom_call.1} parent=5 // pred_check
        %p1209 = pneg %p1208
      $region74: #{tpu_custom_call.1} parent=5 // pred_check_branch
        %1211 = sbr.rel (%p1209) target = $region76
      $region75: #{tpu_custom_call.1} parent=5 // pred_region
        %s1212 = ssub.s32 %s20, 2
        // Predicated region
        $region77: #{tpu_custom_call.1} parent=75 // pred_check
          %p1213 = pneg %p197
        $region78: #{tpu_custom_call.1} parent=75 // pred_check_branch
          %1215 = sbr.rel (%p1213) target = $region80
        $region79: #{tpu_custom_call.1} parent=75 // pred_region
          %s1216 = sand.u32 %s182, 1
          %s1217 = scalar_lea.sflag [#allocation4], %s1216
          %s1218 = sand.u32 %s182, 1
          %s1219 = smul.addr %s1218, 24
          %s1220 = scalar_lea.vmem [#allocation10], %s1219
          %1222 = dma.done %s1217, 384
        $region80: #{tpu_custom_call.1} parent=75 // pred_fallthru
          _
      $region76: #{tpu_custom_call.1} parent=5 // pred_fallthru
        _
    $region6: #{tpu_custom_call.1} parent=1 // loop_footer
      %s24 = sadd.s32 1, %s20
    $region7: #{tpu_custom_call.1} parent=1 // loop_footer_branch
      %19 = sbr.rel target = $region3
    $region8: #{tpu_custom_call.1} parent=1 // loop_exit
      _
    %1223 = vsyncpa [#allocation3], 1
    %s1224 = scalar_lea.sflag [#allocation3], 1
    %1225 = vsyncpa %s1224, 1
    %1226 = vsyncpa [#allocation8], 1
    %s1227 = scalar_lea.sflag [#allocation8], 1
    %1228 = vsyncpa %s1227, 1
    %1229 = vsyncpa [#allocation4], 1
    %s1230 = scalar_lea.sflag [#allocation4], 1
    %1231 = vsyncpa %s1230, 1
    %1232 = vsyncpa [#allocation5], 1
    %s1233 = scalar_lea.sflag [#allocation5], 1
    %1234 = vsyncpa %s1233, 1

</llo_original>
